<compile_context>
chip_gen: v7x
topology: tpu7x:2x2x1
jax: 0.10.0
libtpu: 0.0.40
codegen_flags: <defaults>
</compile_context>

<pallas_src>
import math

import jax
import jax.numpy as jnp
import numpy as np
from jax.experimental import pallas as pl
from jax.experimental.pallas import tpu as pltpu

# ----------------------------- model dimensions ------------------------------
VOCAB = 100
MAX_POS = 16
TYPES = 2
HIDDEN = 32           # "bert hidden_size" (small synthetic value)
NUM_HEADS = 2
HEAD_DIM = HIDDEN // NUM_HEADS
FFN = 64
SEQ = 8
BATCH = 2
BS = BATCH * SEQ
OUT_PAD = 128         # lane-dense output width; real scalar lives in column 0
EPS = 1e-12
GELU_C = 0.7978845608028654  # sqrt(2/pi)

# packed-weight lane offsets inside w_h (all mats with HIDDEN rows, concat on out dim)
_QKV0, _QKV1 = 0, 3 * HIDDEN                    # [  0: 96)  wq*scale | wk | wv
_WO0, _WO1 = _QKV1, _QKV1 + HIDDEN              # [ 96:128)  wo
_F10, _F11 = _WO1, _WO1 + FFN                   # [128:192)  w_ffn1
_WP0, _WP1 = _F11, _F11 + HIDDEN                # [192:224)  pooler weight
_FC10, _FC11 = _WP1, _WP1 + 64                  # [224:288)  fc1 weight
W_H_COLS = _FC11


# ------------------------------ shared math -----------------------------------
def _layernorm(x, gamma, beta, eps=EPS):
    mu = jnp.mean(x, axis=-1, keepdims=True)
    var = jnp.mean((x - mu) ** 2, axis=-1, keepdims=True)
    return (x - mu) * jax.lax.rsqrt(var + eps) * gamma + beta


def _gelu(x):
    # BERT gelu (tanh approximation)
    return 0.5 * x * (1.0 + jnp.tanh(GELU_C * (x + 0.044715 * x * x * x)))


# ------------------------------ fused Pallas kernel ----------------------------
def fused_kernel(x_ref, mask_ref, wh_ref, wf_ref, b_ref, out_ref):
    x = x_ref[...]            # (B*S, H)
    mask = mask_ref[...]      # (B, 1, S) additive attention mask
    wh = wh_ref[...]          # (H, 288) packed H-row weights
    wf = wf_ref[...]          # (FFN, 40) packed FFN-row weights: [w_ffn2 | fc2_w]
    b = b_ref[...]            # (5, 96) packed biases / layernorm params / fc3

    # ---- unpack biases / LN params (static lane slices) ----
    b_qkv = b[0:1, 0:3 * HIDDEN]
    b_o = b[1:2, 0:HIDDEN]
    ln1_g = b[1:2, HIDDEN:2 * HIDDEN]
    ln1_b = b[1:2, 2 * HIDDEN:3 * HIDDEN]
    b_f1 = b[2:3, 0:FFN]
    ln2_g = b[2:3, FFN:FFN + HIDDEN]
    b_f2 = b[3:4, 0:HIDDEN]
    ln2_b = b[3:4, HIDDEN:2 * HIDDEN]
    b_pool = b[3:4, 2 * HIDDEN:3 * HIDDEN]
    b_fc1 = b[4:5, 0:64]
    b_fc2 = b[4:5, 64:72]
    w_fc3 = b[4:5, 72:80]      # fc3 weight as a (1, 8) row
    b_fc3 = b[4:5, 80:81]

    # ---- fused Q/K/V projection (1/sqrt(HEAD_DIM) pre-folded into Q cols/bias) ----
    qkv = jnp.dot(x, wh[:, _QKV0:_QKV1], preferred_element_type=jnp.float32) + b_qkv

    # ---- self-attention: heads statically unrolled, each batched over B via einsum ----
    w_o = wh[:, _WO0:_WO1]                                     # (H, H)
    parts = []
    for h in range(NUM_HEADS):                                 # static unroll (2 heads)
        q = qkv[:, h * HEAD_DIM:(h + 1) * HEAD_DIM].reshape(BATCH, SEQ, HEAD_DIM)
        k = qkv[:, HIDDEN + h * HEAD_DIM:HIDDEN + (h + 1) * HEAD_DIM].reshape(
            BATCH, SEQ, HEAD_DIM)
        v = qkv[:, 2 * HIDDEN + h * HEAD_DIM:2 * HIDDEN + (h + 1) * HEAD_DIM].reshape(
            BATCH, SEQ, HEAD_DIM)
        s = jnp.einsum('bqd,bkd->bqk', q, k, preferred_element_type=jnp.float32)
        s = s + mask                                           # (B,1,S) -> (B,S,S)
        s = s - jnp.max(s, axis=-1, keepdims=True)
        e = jnp.exp(s)
        probs = e * pl.reciprocal(jnp.sum(e, axis=-1, keepdims=True), approx=True)
        ctx = jnp.einsum('bqk,bkd->bqd', probs, v, preferred_element_type=jnp.float32)
        # output projection split by Wo row-blocks -> no per-head lane concat needed
        parts.append(jnp.dot(ctx.reshape(BS, HEAD_DIM),
                             w_o[h * HEAD_DIM:(h + 1) * HEAD_DIM, :],
                             preferred_element_type=jnp.float32))
    attn_out = parts[0] + parts[1] + b_o

    h1 = _layernorm(x + attn_out, ln1_g, ln1_b)

    # ---- FFN ----
    ffn = _gelu(jnp.dot(h1, wh[:, _F10:_F11], preferred_element_type=jnp.float32) + b_f1)
    ffn = jnp.dot(ffn, wf[:, 0:HIDDEN], preferred_element_type=jnp.float32) + b_f2
    h2 = _layernorm(h1 + ffn, ln2_g, ln2_b)

    # ---- CLS row -> pooler -> fc head (fused; no HBM round-trip of hidden states) ----
    cls = h2.reshape(BATCH, SEQ, HIDDEN)[:, 0:1, :].reshape(BATCH, HIDDEN)
    pooled = jnp.tanh(
        jnp.dot(cls, wh[:, _WP0:_WP1], preferred_element_type=jnp.float32) + b_pool)
    # dropout: identity (eval mode)
    z = jnp.dot(pooled, wh[:, _FC10:_FC11], preferred_element_type=jnp.float32) + b_fc1
    z = jnp.where(z > 0, z, 0.01 * z)                          # LeakyReLU(0.01)
    z = jnp.dot(z, wf[:, HIDDEN:HIDDEN + 8], preferred_element_type=jnp.float32) + b_fc2
    z = pl.reciprocal(1.0 + jnp.exp(-z), approx=True)          # Sigmoid via EUP recip
    out = jnp.sum(z * w_fc3, axis=-1, keepdims=True) + b_fc3   # fc3: Linear(8 -> 1)

    out_ref[...] = jnp.broadcast_to(out, (BATCH, OUT_PAD))     # lane-dense store


# ------------------------------ wrappers ---------------------------------------
def pack_params(p):
    """Pack all 27 small weights/biases into 3 arrays (fewer DMA descriptors)."""
    scale = 1.0 / math.sqrt(HEAD_DIM)
    w_h = jnp.concatenate([p["wq"] * scale, p["wk"], p["wv"], p["wo"],
                           p["w_ffn1"], p["wp"], p["fc1_w"]], axis=1)        # (H, 288)
    w_f = jnp.concatenate([p["w_ffn2"], p["fc2_w"]], axis=1)                 # (FFN, 40)
    rows = [
        jnp.concatenate([p["bq"] * scale, p["bk"], p["bv"]], axis=1),        # 96
        jnp.concatenate([p["bo"], p["ln1_g"], p["ln1_b"]], axis=1),          # 96
        jnp.concatenate([p["b_ffn1"], p["ln2_g"]], axis=1),                  # 96
        jnp.concatenate([p["b_ffn2"], p["ln2_b"], p["bp"]], axis=1),         # 96
        jnp.concatenate([p["fc1_b"], p["fc2_b"], p["fc3_w"].T, p["fc3_b"],
                         jnp.zeros((1, 15), jnp.float32)], axis=1),          # 96
    ]
    b_pack = jnp.concatenate(rows, axis=0)                                   # (5, 96)
    return w_h, w_f, b_pack


def backbone_embed(p, input_ids, token_type_ids):
    B, S = input_ids.shape
    pos = jnp.arange(S)
    x = (p["word_emb"][input_ids]
         + p["pos_emb"][pos][None, :, :]
         + p["type_emb"][token_type_ids])
    return _layernorm(x, p["emb_ln_g"], p["emb_ln_b"])


@jax.jit
def model_forward(p, input_ids, attention_mask, token_type_ids):
    x = backbone_embed(p, input_ids, token_type_ids)               # glue (gather + LN)
    mask3 = ((1.0 - attention_mask.astype(jnp.float32)) * -10000.0)[:, None, :]  # (B,1,S)
    w_h, w_f, b_pack = pack_params(p)                              # tiny glue, fused by XLA
    out_pad = pl.pallas_call(
        fused_kernel,
        out_shape=jax.ShapeDtypeStruct((BATCH, OUT_PAD), jnp.float32),
        in_specs=[pl.BlockSpec(memory_space=pltpu.MemorySpace.VMEM)] * 5,
        out_specs=pl.BlockSpec(memory_space=pltpu.MemorySpace.VMEM),
    )(x.reshape(BS, HIDDEN), mask3, w_h, w_f, b_pack)
    return out_pad[:, 0:1]                                          # (B, 1)


# ------------------------------ reference (pure JAX) ---------------------------
def reference_forward(p, input_ids, attention_mask, token_type_ids):
    x = backbone_embed(p, input_ids, token_type_ids)
    mask_add = (1.0 - attention_mask.astype(jnp.float32))[:, None, :] * -10000.0
    outs = []
    for bi in range(x.shape[0]):
        xb = x[bi]
        q = xb @ p["wq"] + p["bq"]
        k = xb @ p["wk"] + p["bk"]
        v = xb @ p["wv"] + p["bv"]
        scale = 1.0 / math.sqrt(HEAD_DIM)
        ctx = []
        for h in range(NUM_HEADS):
            sl = slice(h * HEAD_DIM, (h + 1) * HEAD_DIM)
            s = q[:, sl] @ k[:, sl].T * scale + mask_add[bi]
            s = s - jnp.max(s, axis=-1, keepdims=True)
            pr = jnp.exp(s)
            pr = pr / jnp.sum(pr, axis=-1, keepdims=True)
            ctx.append(pr @ v[:, sl])
        ctx = jnp.concatenate(ctx, axis=-1)
        h1 = _layernorm(xb + ctx @ p["wo"] + p["bo"], p["ln1_g"], p["ln1_b"])
        ffn = _gelu(h1 @ p["w_ffn1"] + p["b_ffn1"]) @ p["w_ffn2"] + p["b_ffn2"]
        outs.append(_layernorm(h1 + ffn, p["ln2_g"], p["ln2_b"]))
    hidden = jnp.stack(outs, axis=0)
    cls = hidden[:, 0, :]
    pooled = jnp.tanh(cls @ p["wp"] + p["bp"])
    h = pooled @ p["fc1_w"] + p["fc1_b"]
    h = jnp.where(h > 0, h, 0.01 * h)
    h = h @ p["fc2_w"] + p["fc2_b"]
    h = 1.0 / (1.0 + jnp.exp(-h))
    return h @ p["fc3_w"] + p["fc3_b"]


# ------------------------------ parameter init ---------------------------------
def init_params(key):
    ks = iter(jax.random.split(key, 32))

    def nrm(shape):
        return jax.random.normal(next(ks), shape, jnp.float32) * 0.02

    return {
        "word_emb": nrm((VOCAB, HIDDEN)),
        "pos_emb": nrm((MAX_POS, HIDDEN)),
        "type_emb": nrm((TYPES, HIDDEN)),
        "emb_ln_g": jnp.ones((1, HIDDEN), jnp.float32),
        "emb_ln_b": jnp.zeros((1, HIDDEN), jnp.float32),
        "wq": nrm((HIDDEN, HIDDEN)), "bq": jnp.zeros((1, HIDDEN), jnp.float32),
        "wk": nrm((HIDDEN, HIDDEN)), "bk": jnp.zeros((1, HIDDEN), jnp.float32),
        "wv": nrm((HIDDEN, HIDDEN)), "bv": jnp.zeros((1, HIDDEN), jnp.float32),
        "wo": nrm((HIDDEN, HIDDEN)), "bo": jnp.zeros((1, HIDDEN), jnp.float32),
        "ln1_g": jnp.ones((1, HIDDEN), jnp.float32),
        "ln1_b": jnp.zeros((1, HIDDEN), jnp.float32),
        "w_ffn1": nrm((HIDDEN, FFN)), "b_ffn1": jnp.zeros((1, FFN), jnp.float32),
        "w_ffn2": nrm((FFN, HIDDEN)), "b_ffn2": jnp.zeros((1, HIDDEN), jnp.float32),
        "ln2_g": jnp.ones((1, HIDDEN), jnp.float32),
        "ln2_b": jnp.zeros((1, HIDDEN), jnp.float32),
        "wp": nrm((HIDDEN, HIDDEN)), "bp": jnp.zeros((1, HIDDEN), jnp.float32),
        # fc head: Linear(hidden,64) -> LeakyReLU -> Linear(64,8) -> Sigmoid -> Linear(8,1)
        "fc1_w": nrm((HIDDEN, 64)), "fc1_b": jnp.zeros((1, 64), jnp.float32),
        "fc2_w": nrm((64, 8)), "fc2_b": jnp.zeros((1, 8), jnp.float32),
        "fc3_w": nrm((8, 1)), "fc3_b": jnp.zeros((1, 1), jnp.float32),
    }


# ------------------------------ main --------------------------------------------
if __name__ == "__main__":
    key = jax.random.PRNGKey(0)
    pkey, ikey = jax.random.split(key)
    params = init_params(pkey)

    input_ids = jax.random.randint(ikey, (BATCH, SEQ), 0, VOCAB, dtype=jnp.int32)
    attention_mask = jnp.array(
        [[1, 1, 1, 1, 1, 1, 1, 1],
         [1, 1, 1, 1, 1, 0, 0, 0]], dtype=jnp.int32)
    token_type_ids = jnp.zeros((BATCH, SEQ), dtype=jnp.int32)

    out = model_forward(params, input_ids, attention_mask, token_type_ids)
    out = jax.block_until_ready(out)

    ref = reference_forward(params, input_ids, attention_mask, token_type_ids)
    # slightly looser tolerance than before because softmax denom / sigmoid use the
    # EUP approximate reciprocal (pl.reciprocal(approx=True)).
    np.testing.assert_allclose(np.asarray(out), np.asarray(ref), rtol=2e-3, atol=1e-4)
    assert out.shape == (BATCH, 1)

    print("KERNEL_OK")
</pallas_src>

<mosaic_0001>
module attributes {stable_mosaic.version = 11 : i64} {
  func.func @fused_kernel(%arg0: memref<16x32xf32, #tpu.memory_space<vmem>>, %arg1: memref<2x1x8xf32, #tpu.memory_space<vmem>>, %arg2: memref<32x288xf32, #tpu.memory_space<vmem>>, %arg3: memref<64x40xf32, #tpu.memory_space<vmem>>, %arg4: memref<5x96xf32, #tpu.memory_space<vmem>>, %arg5: memref<2x128xf32, #tpu.memory_space<vmem>>) attributes {dimension_semantics = [], scalar_prefetch = 0 : i64, scratch_operands = 0 : i64, tpu.core_type = #tpu.core_type<tc>} {
    %c0 = arith.constant 0 : index
    %c0_0 = arith.constant 0 : index
    %0 = vector.load %arg0[%c0, %c0_0] : memref<16x32xf32, #tpu.memory_space<vmem>>, vector<16x32xf32>
    %c0_1 = arith.constant 0 : index
    %c0_2 = arith.constant 0 : index
    %c0_3 = arith.constant 0 : index
    %1 = vector.load %arg1[%c0_1, %c0_2, %c0_3] : memref<2x1x8xf32, #tpu.memory_space<vmem>>, vector<2x1x8xf32>
    %c0_4 = arith.constant 0 : index
    %c0_5 = arith.constant 0 : index
    %2 = vector.load %arg2[%c0_4, %c0_5] : memref<32x288xf32, #tpu.memory_space<vmem>>, vector<32x288xf32>
    %c0_6 = arith.constant 0 : index
    %c0_7 = arith.constant 0 : index
    %3 = vector.load %arg3[%c0_6, %c0_7] : memref<64x40xf32, #tpu.memory_space<vmem>>, vector<64x40xf32>
    %c0_8 = arith.constant 0 : index
    %c0_9 = arith.constant 0 : index
    %4 = vector.load %arg4[%c0_8, %c0_9] : memref<5x96xf32, #tpu.memory_space<vmem>>, vector<5x96xf32>
    %5 = vector.extract_strided_slice %4 {offsets = [0, 0], sizes = [1, 96], strides = [1, 1]} : vector<5x96xf32> to vector<1x96xf32>
    %6 = vector.extract_strided_slice %4 {offsets = [1, 0], sizes = [1, 32], strides = [1, 1]} : vector<5x96xf32> to vector<1x32xf32>
    %7 = vector.extract_strided_slice %4 {offsets = [1, 32], sizes = [1, 32], strides = [1, 1]} : vector<5x96xf32> to vector<1x32xf32>
    %8 = vector.extract_strided_slice %4 {offsets = [1, 64], sizes = [1, 32], strides = [1, 1]} : vector<5x96xf32> to vector<1x32xf32>
    %9 = vector.extract_strided_slice %4 {offsets = [2, 0], sizes = [1, 64], strides = [1, 1]} : vector<5x96xf32> to vector<1x64xf32>
    %10 = vector.extract_strided_slice %4 {offsets = [2, 64], sizes = [1, 32], strides = [1, 1]} : vector<5x96xf32> to vector<1x32xf32>
    %11 = vector.extract_strided_slice %4 {offsets = [3, 0], sizes = [1, 32], strides = [1, 1]} : vector<5x96xf32> to vector<1x32xf32>
    %12 = vector.extract_strided_slice %4 {offsets = [3, 32], sizes = [1, 32], strides = [1, 1]} : vector<5x96xf32> to vector<1x32xf32>
    %13 = vector.extract_strided_slice %4 {offsets = [3, 64], sizes = [1, 32], strides = [1, 1]} : vector<5x96xf32> to vector<1x32xf32>
    %14 = vector.extract_strided_slice %4 {offsets = [4, 0], sizes = [1, 64], strides = [1, 1]} : vector<5x96xf32> to vector<1x64xf32>
    %15 = vector.extract_strided_slice %4 {offsets = [4, 64], sizes = [1, 8], strides = [1, 1]} : vector<5x96xf32> to vector<1x8xf32>
    %16 = vector.extract_strided_slice %4 {offsets = [4, 72], sizes = [1, 8], strides = [1, 1]} : vector<5x96xf32> to vector<1x8xf32>
    %17 = vector.extract_strided_slice %4 {offsets = [4, 80], sizes = [1, 1], strides = [1, 1]} : vector<5x96xf32> to vector<1x1xf32>
    %18 = vector.extract_strided_slice %2 {offsets = [0, 0], sizes = [32, 96], strides = [1, 1]} : vector<32x288xf32> to vector<32x96xf32>
    %cst = arith.constant dense<0.000000e+00> : vector<16x96xf32>
    %19 = tpu.matmul %0, %18, %cst {dimension_numbers = #tpu.dot_dimension_numbers<[1], [0], [0], [1], [0, 0, 1, 1], [], []>} : vector<16x32xf32>, vector<32x96xf32>, vector<16x96xf32> -> vector<16x96xf32>
    %20 = vector.broadcast %5 : vector<1x96xf32> to vector<16x96xf32>
    %21 = arith.addf %19, %20 : vector<16x96xf32>
    %22 = vector.extract_strided_slice %2 {offsets = [0, 96], sizes = [32, 32], strides = [1, 1]} : vector<32x288xf32> to vector<32x32xf32>
    %23 = vector.extract_strided_slice %21 {offsets = [0, 0], sizes = [16, 16], strides = [1, 1]} : vector<16x96xf32> to vector<16x16xf32>
    %24 = vector.shape_cast %23 : vector<16x16xf32> to vector<2x8x16xf32>
    %25 = vector.extract_strided_slice %21 {offsets = [0, 32], sizes = [16, 16], strides = [1, 1]} : vector<16x96xf32> to vector<16x16xf32>
    %26 = vector.shape_cast %25 : vector<16x16xf32> to vector<2x8x16xf32>
    %27 = vector.extract_strided_slice %21 {offsets = [0, 64], sizes = [16, 16], strides = [1, 1]} : vector<16x96xf32> to vector<16x16xf32>
    %28 = vector.shape_cast %27 : vector<16x16xf32> to vector<2x8x16xf32>
    "tpu.trace_start"() <{level = 10 : i32, message = "bqd,bkd->bqk"}> : () -> ()
    %cst_10 = arith.constant dense<0.000000e+00> : vector<2x8x8xf32>
    %29 = tpu.matmul %24, %26, %cst_10 {dimension_numbers = #tpu.dot_dimension_numbers<[2], [2], [1], [1], [0, 0, 0, 1, 1, 1], [0], [0]>} : vector<2x8x16xf32>, vector<2x8x16xf32>, vector<2x8x8xf32> -> vector<2x8x8xf32>
    "tpu.trace_stop"() : () -> ()
    %30 = vector.broadcast %1 : vector<2x1x8xf32> to vector<2x8x8xf32>
    %31 = arith.addf %29, %30 : vector<2x8x8xf32>
    %cst_11 = arith.constant dense<0xFF800000> : vector<2x8xf32>
    %32 = vector.multi_reduction <maximumf>, %31, %cst_11 [2] : vector<2x8x8xf32> to vector<2x8xf32>
    %33 = vector.shape_cast %32 : vector<2x8xf32> to vector<2x8x1xf32>
    %34 = vector.broadcast %33 : vector<2x8x1xf32> to vector<2x8x8xf32>
    %35 = arith.subf %31, %34 : vector<2x8x8xf32>
    %36 = math.exp %35 : vector<2x8x8xf32>
    %cst_12 = arith.constant dense<0.000000e+00> : vector<2x8xf32>
    %37 = vector.multi_reduction <add>, %36, %cst_12 [2] : vector<2x8x8xf32> to vector<2x8xf32>
    %38 = vector.shape_cast %37 : vector<2x8xf32> to vector<2x8x1xf32>
    %39 = tpu.reciprocal %38 {approx = true} : vector<2x8x1xf32> -> vector<2x8x1xf32>
    %40 = vector.broadcast %39 : vector<2x8x1xf32> to vector<2x8x8xf32>
    %41 = arith.mulf %36, %40 : vector<2x8x8xf32>
    "tpu.trace_start"() <{level = 10 : i32, message = "bqk,bkd->bqd"}> : () -> ()
    %cst_13 = arith.constant dense<0.000000e+00> : vector<2x8x16xf32>
    %42 = tpu.matmul %41, %28, %cst_13 {dimension_numbers = #tpu.dot_dimension_numbers<[2], [1], [1], [2], [0, 0, 0, 1, 1, 2], [0], [0]>} : vector<2x8x8xf32>, vector<2x8x16xf32>, vector<2x8x16xf32> -> vector<2x8x16xf32>
    "tpu.trace_stop"() : () -> ()
    %43 = vector.shape_cast %42 : vector<2x8x16xf32> to vector<16x16xf32>
    %44 = vector.extract_strided_slice %22 {offsets = [0, 0], sizes = [16, 32], strides = [1, 1]} : vector<32x32xf32> to vector<16x32xf32>
    %cst_14 = arith.constant dense<0.000000e+00> : vector<16x32xf32>
    %45 = tpu.matmul %43, %44, %cst_14 {dimension_numbers = #tpu.dot_dimension_numbers<[1], [0], [0], [1], [0, 0, 1, 1], [], []>} : vector<16x16xf32>, vector<16x32xf32>, vector<16x32xf32> -> vector<16x32xf32>
    %46 = vector.extract_strided_slice %21 {offsets = [0, 16], sizes = [16, 16], strides = [1, 1]} : vector<16x96xf32> to vector<16x16xf32>
    %47 = vector.shape_cast %46 : vector<16x16xf32> to vector<2x8x16xf32>
    %48 = vector.extract_strided_slice %21 {offsets = [0, 48], sizes = [16, 16], strides = [1, 1]} : vector<16x96xf32> to vector<16x16xf32>
    %49 = vector.shape_cast %48 : vector<16x16xf32> to vector<2x8x16xf32>
    %50 = vector.extract_strided_slice %21 {offsets = [0, 80], sizes = [16, 16], strides = [1, 1]} : vector<16x96xf32> to vector<16x16xf32>
    %51 = vector.shape_cast %50 : vector<16x16xf32> to vector<2x8x16xf32>
    "tpu.trace_start"() <{level = 10 : i32, message = "bqd,bkd->bqk"}> : () -> ()
    %cst_15 = arith.constant dense<0.000000e+00> : vector<2x8x8xf32>
    %52 = tpu.matmul %47, %49, %cst_15 {dimension_numbers = #tpu.dot_dimension_numbers<[2], [2], [1], [1], [0, 0, 0, 1, 1, 1], [0], [0]>} : vector<2x8x16xf32>, vector<2x8x16xf32>, vector<2x8x8xf32> -> vector<2x8x8xf32>
    "tpu.trace_stop"() : () -> ()
    %53 = vector.broadcast %1 : vector<2x1x8xf32> to vector<2x8x8xf32>
    %54 = arith.addf %52, %53 : vector<2x8x8xf32>
    %cst_16 = arith.constant dense<0xFF800000> : vector<2x8xf32>
    %55 = vector.multi_reduction <maximumf>, %54, %cst_16 [2] : vector<2x8x8xf32> to vector<2x8xf32>
    %56 = vector.shape_cast %55 : vector<2x8xf32> to vector<2x8x1xf32>
    %57 = vector.broadcast %56 : vector<2x8x1xf32> to vector<2x8x8xf32>
    %58 = arith.subf %54, %57 : vector<2x8x8xf32>
    %59 = math.exp %58 : vector<2x8x8xf32>
    %cst_17 = arith.constant dense<0.000000e+00> : vector<2x8xf32>
    %60 = vector.multi_reduction <add>, %59, %cst_17 [2] : vector<2x8x8xf32> to vector<2x8xf32>
    %61 = vector.shape_cast %60 : vector<2x8xf32> to vector<2x8x1xf32>
    %62 = tpu.reciprocal %61 {approx = true} : vector<2x8x1xf32> -> vector<2x8x1xf32>
    %63 = vector.broadcast %62 : vector<2x8x1xf32> to vector<2x8x8xf32>
    %64 = arith.mulf %59, %63 : vector<2x8x8xf32>
    "tpu.trace_start"() <{level = 10 : i32, message = "bqk,bkd->bqd"}> : () -> ()
    %cst_18 = arith.constant dense<0.000000e+00> : vector<2x8x16xf32>
    %65 = tpu.matmul %64, %51, %cst_18 {dimension_numbers = #tpu.dot_dimension_numbers<[2], [1], [1], [2], [0, 0, 0, 1, 1, 2], [0], [0]>} : vector<2x8x8xf32>, vector<2x8x16xf32>, vector<2x8x16xf32> -> vector<2x8x16xf32>
    "tpu.trace_stop"() : () -> ()
    %66 = vector.shape_cast %65 : vector<2x8x16xf32> to vector<16x16xf32>
    %67 = vector.extract_strided_slice %22 {offsets = [16, 0], sizes = [16, 32], strides = [1, 1]} : vector<32x32xf32> to vector<16x32xf32>
    %cst_19 = arith.constant dense<0.000000e+00> : vector<16x32xf32>
    %68 = tpu.matmul %66, %67, %cst_19 {dimension_numbers = #tpu.dot_dimension_numbers<[1], [0], [0], [1], [0, 0, 1, 1], [], []>} : vector<16x16xf32>, vector<16x32xf32>, vector<16x32xf32> -> vector<16x32xf32>
    %69 = arith.addf %45, %68 : vector<16x32xf32>
    %70 = vector.broadcast %6 : vector<1x32xf32> to vector<16x32xf32>
    %71 = arith.addf %69, %70 : vector<16x32xf32>
    %72 = arith.addf %0, %71 : vector<16x32xf32>
    %cst_20 = arith.constant dense<0.000000e+00> : vector<16xf32>
    %73 = vector.multi_reduction <add>, %72, %cst_20 [1] : vector<16x32xf32> to vector<16xf32>
    %74 = vector.shape_cast %73 : vector<16xf32> to vector<16x1xf32>
    %cst_21 = arith.constant 3.200000e+01 : f32
    %75 = vector.broadcast %cst_21 : f32 to vector<16x1xf32>
    %76 = arith.divf %74, %75 : vector<16x1xf32>
    %77 = vector.broadcast %76 : vector<16x1xf32> to vector<16x32xf32>
    %78 = arith.subf %72, %77 : vector<16x32xf32>
    %79 = arith.mulf %78, %78 : vector<16x32xf32>
    %cst_22 = arith.constant dense<0.000000e+00> : vector<16xf32>
    %80 = vector.multi_reduction <add>, %79, %cst_22 [1] : vector<16x32xf32> to vector<16xf32>
    %81 = vector.shape_cast %80 : vector<16xf32> to vector<16x1xf32>
    %cst_23 = arith.constant 3.200000e+01 : f32
    %82 = vector.broadcast %cst_23 : f32 to vector<16x1xf32>
    %83 = arith.divf %81, %82 : vector<16x1xf32>
    %84 = vector.broadcast %76 : vector<16x1xf32> to vector<16x32xf32>
    %85 = arith.subf %72, %84 : vector<16x32xf32>
    %cst_24 = arith.constant 9.99999996E-13 : f32
    %86 = vector.broadcast %cst_24 : f32 to vector<16x1xf32>
    %87 = arith.addf %83, %86 : vector<16x1xf32>
    %88 = math.rsqrt %87 : vector<16x1xf32>
    %89 = vector.broadcast %88 : vector<16x1xf32> to vector<16x32xf32>
    %90 = arith.mulf %85, %89 : vector<16x32xf32>
    %91 = vector.broadcast %7 : vector<1x32xf32> to vector<16x32xf32>
    %92 = arith.mulf %90, %91 : vector<16x32xf32>
    %93 = vector.broadcast %8 : vector<1x32xf32> to vector<16x32xf32>
    %94 = arith.addf %92, %93 : vector<16x32xf32>
    %95 = vector.extract_strided_slice %2 {offsets = [0, 128], sizes = [32, 64], strides = [1, 1]} : vector<32x288xf32> to vector<32x64xf32>
    %cst_25 = arith.constant dense<0.000000e+00> : vector<16x64xf32>
    %96 = tpu.matmul %94, %95, %cst_25 {dimension_numbers = #tpu.dot_dimension_numbers<[1], [0], [0], [1], [0, 0, 1, 1], [], []>} : vector<16x32xf32>, vector<32x64xf32>, vector<16x64xf32> -> vector<16x64xf32>
    %97 = vector.broadcast %9 : vector<1x64xf32> to vector<16x64xf32>
    %98 = arith.addf %96, %97 : vector<16x64xf32>
    %cst_26 = arith.constant 5.000000e-01 : f32
    %99 = vector.broadcast %cst_26 : f32 to vector<16x64xf32>
    %100 = arith.mulf %99, %98 : vector<16x64xf32>
    %cst_27 = arith.constant 4.471500e-02 : f32
    %101 = vector.broadcast %cst_27 : f32 to vector<16x64xf32>
    %102 = arith.mulf %101, %98 : vector<16x64xf32>
    %103 = arith.mulf %102, %98 : vector<16x64xf32>
    %104 = arith.mulf %103, %98 : vector<16x64xf32>
    %105 = arith.addf %98, %104 : vector<16x64xf32>
    %cst_28 = arith.constant 0.797884583 : f32
    %106 = vector.broadcast %cst_28 : f32 to vector<16x64xf32>
    %107 = arith.mulf %106, %105 : vector<16x64xf32>
    %108 = math.tanh %107 : vector<16x64xf32>
    %cst_29 = arith.constant 1.000000e+00 : f32
    %109 = vector.broadcast %cst_29 : f32 to vector<16x64xf32>
    %110 = arith.addf %109, %108 : vector<16x64xf32>
    %111 = arith.mulf %100, %110 : vector<16x64xf32>
    %112 = vector.extract_strided_slice %3 {offsets = [0, 0], sizes = [64, 32], strides = [1, 1]} : vector<64x40xf32> to vector<64x32xf32>
    %cst_30 = arith.constant dense<0.000000e+00> : vector<16x32xf32>
    %113 = tpu.matmul %111, %112, %cst_30 {dimension_numbers = #tpu.dot_dimension_numbers<[1], [0], [0], [1], [0, 0, 1, 1], [], []>} : vector<16x64xf32>, vector<64x32xf32>, vector<16x32xf32> -> vector<16x32xf32>
    %114 = vector.broadcast %11 : vector<1x32xf32> to vector<16x32xf32>
    %115 = arith.addf %113, %114 : vector<16x32xf32>
    %116 = arith.addf %94, %115 : vector<16x32xf32>
    %cst_31 = arith.constant dense<0.000000e+00> : vector<16xf32>
    %117 = vector.multi_reduction <add>, %116, %cst_31 [1] : vector<16x32xf32> to vector<16xf32>
    %118 = vector.shape_cast %117 : vector<16xf32> to vector<16x1xf32>
    %cst_32 = arith.constant 3.200000e+01 : f32
    %119 = vector.broadcast %cst_32 : f32 to vector<16x1xf32>
    %120 = arith.divf %118, %119 : vector<16x1xf32>
    %121 = vector.broadcast %120 : vector<16x1xf32> to vector<16x32xf32>
    %122 = arith.subf %116, %121 : vector<16x32xf32>
    %123 = arith.mulf %122, %122 : vector<16x32xf32>
    %cst_33 = arith.constant dense<0.000000e+00> : vector<16xf32>
    %124 = vector.multi_reduction <add>, %123, %cst_33 [1] : vector<16x32xf32> to vector<16xf32>
    %125 = vector.shape_cast %124 : vector<16xf32> to vector<16x1xf32>
    %cst_34 = arith.constant 3.200000e+01 : f32
    %126 = vector.broadcast %cst_34 : f32 to vector<16x1xf32>
    %127 = arith.divf %125, %126 : vector<16x1xf32>
    %128 = vector.broadcast %120 : vector<16x1xf32> to vector<16x32xf32>
    %129 = arith.subf %116, %128 : vector<16x32xf32>
    %cst_35 = arith.constant 9.99999996E-13 : f32
    %130 = vector.broadcast %cst_35 : f32 to vector<16x1xf32>
    %131 = arith.addf %127, %130 : vector<16x1xf32>
    %132 = math.rsqrt %131 : vector<16x1xf32>
    %133 = vector.broadcast %132 : vector<16x1xf32> to vector<16x32xf32>
    %134 = arith.mulf %129, %133 : vector<16x32xf32>
    %135 = vector.broadcast %10 : vector<1x32xf32> to vector<16x32xf32>
    %136 = arith.mulf %134, %135 : vector<16x32xf32>
    %137 = vector.broadcast %12 : vector<1x32xf32> to vector<16x32xf32>
    %138 = arith.addf %136, %137 : vector<16x32xf32>
    %139 = vector.shape_cast %138 : vector<16x32xf32> to vector<2x8x32xf32>
    %140 = vector.extract_strided_slice %139 {offsets = [0, 0, 0], sizes = [2, 1, 32], strides = [1, 1, 1]} : vector<2x8x32xf32> to vector<2x1x32xf32>
    %141 = vector.shape_cast %140 : vector<2x1x32xf32> to vector<2x32xf32>
    %142 = vector.extract_strided_slice %2 {offsets = [0, 192], sizes = [32, 32], strides = [1, 1]} : vector<32x288xf32> to vector<32x32xf32>
    %cst_36 = arith.constant dense<0.000000e+00> : vector<2x32xf32>
    %143 = tpu.matmul %141, %142, %cst_36 {dimension_numbers = #tpu.dot_dimension_numbers<[1], [0], [0], [1], [0, 0, 1, 1], [], []>} : vector<2x32xf32>, vector<32x32xf32>, vector<2x32xf32> -> vector<2x32xf32>
    %144 = vector.broadcast %13 : vector<1x32xf32> to vector<2x32xf32>
    %145 = arith.addf %143, %144 : vector<2x32xf32>
    %146 = math.tanh %145 : vector<2x32xf32>
    %147 = vector.extract_strided_slice %2 {offsets = [0, 224], sizes = [32, 64], strides = [1, 1]} : vector<32x288xf32> to vector<32x64xf32>
    %cst_37 = arith.constant dense<0.000000e+00> : vector<2x64xf32>
    %148 = tpu.matmul %146, %147, %cst_37 {dimension_numbers = #tpu.dot_dimension_numbers<[1], [0], [0], [1], [0, 0, 1, 1], [], []>} : vector<2x32xf32>, vector<32x64xf32>, vector<2x64xf32> -> vector<2x64xf32>
    %149 = vector.broadcast %14 : vector<1x64xf32> to vector<2x64xf32>
    %150 = arith.addf %148, %149 : vector<2x64xf32>
    %cst_38 = arith.constant 0.000000e+00 : f32
    %151 = vector.broadcast %cst_38 : f32 to vector<2x64xf32>
    %152 = arith.cmpf ogt, %150, %151 : vector<2x64xf32>
    %cst_39 = arith.constant 0.00999999977 : f32
    %153 = vector.broadcast %cst_39 : f32 to vector<2x64xf32>
    %154 = arith.mulf %153, %150 : vector<2x64xf32>
    %155 = arith.select %152, %150, %154 : vector<2x64xi1>, vector<2x64xf32>
    %156 = vector.extract_strided_slice %3 {offsets = [0, 32], sizes = [64, 8], strides = [1, 1]} : vector<64x40xf32> to vector<64x8xf32>
    %cst_40 = arith.constant dense<0.000000e+00> : vector<2x8xf32>
    %157 = tpu.matmul %155, %156, %cst_40 {dimension_numbers = #tpu.dot_dimension_numbers<[1], [0], [0], [1], [0, 0, 1, 1], [], []>} : vector<2x64xf32>, vector<64x8xf32>, vector<2x8xf32> -> vector<2x8xf32>
    %158 = vector.broadcast %15 : vector<1x8xf32> to vector<2x8xf32>
    %159 = arith.addf %157, %158 : vector<2x8xf32>
    %cst_41 = arith.constant 0.000000e+00 : f32
    %160 = vector.broadcast %cst_41 : f32 to vector<2x8xf32>
    %161 = arith.subf %160, %159 : vector<2x8xf32>
    %162 = math.exp %161 : vector<2x8xf32>
    %cst_42 = arith.constant 1.000000e+00 : f32
    %163 = vector.broadcast %cst_42 : f32 to vector<2x8xf32>
    %164 = arith.addf %163, %162 : vector<2x8xf32>
    %165 = tpu.reciprocal %164 {approx = true} : vector<2x8xf32> -> vector<2x8xf32>
    %166 = vector.broadcast %16 : vector<1x8xf32> to vector<2x8xf32>
    %167 = arith.mulf %165, %166 : vector<2x8xf32>
    %cst_43 = arith.constant dense<0.000000e+00> : vector<2xf32>
    %168 = vector.multi_reduction <add>, %167, %cst_43 [1] : vector<2x8xf32> to vector<2xf32>
    %169 = vector.shape_cast %168 : vector<2xf32> to vector<2x1xf32>
    %170 = vector.broadcast %17 : vector<1x1xf32> to vector<2x1xf32>
    %171 = arith.addf %169, %170 : vector<2x1xf32>
    %172 = vector.shape_cast %171 : vector<2x1xf32> to vector<2x1xf32>
    %173 = vector.broadcast %172 : vector<2x1xf32> to vector<2x128xf32>
    %c0_44 = arith.constant 0 : index
    %c0_45 = arith.constant 0 : index
    %174 = vector.load %arg5[%c0_44, %c0_45] : memref<2x128xf32, #tpu.memory_space<vmem>>, vector<2x128xf32>
    tpu.vector_store %arg5[%c0_44, %c0_45], %173 {strides = array<i32>} : memref<2x128xf32, #tpu.memory_space<vmem>>, vector<2x128xf32>,
    return
  }
}

</mosaic_0001>

<llo_original>
// kernel: model_forward.1
$region0: #{model_forward.1}
  #allocation0 [shape = 'u32[]', space=smem, size = 0x4, offset = 0x4, fixed_abs, tag = 'smem constant byte address 0x4 - core index']
  #allocation1 [shape = 'u32[144,128]{1,0:T(1,128)}', space=vmem, size = 0x12000, scoped, tag = 'internal scratch']
  %s0 = inlined_call_operand.vmem [shape: f32[16,32], index: 0, kind: input, shape index: {}]
  %s1 = inlined_call_operand.vmem [shape: f32[2,1,8], index: 1, kind: input, shape index: {}]
  %s2 = inlined_call_operand.vmem [shape: f32[32,288], index: 2, kind: input, shape index: {}]
  %s3 = inlined_call_operand.vmem [shape: f32[64,40], index: 3, kind: input, shape index: {}]
  %s4 = inlined_call_operand.vmem [shape: f32[5,96], index: 4, kind: input, shape index: {}]
  %s5 = inlined_call_operand.vmem [shape: f32[2,128], index: 5, kind: output, shape index: {}]
  %s6 = sld [smem:[#allocation0]]
  $region30: #{model_forward.1} parent=0
    _
  %s8 = ssub.s32 1, %s6
  %s9 = scalar_select 0, %s8, %s6
  // Predicated region
  $region2: #{model_forward.1} parent=0 // pred_check
    _
  $region3: #{model_forward.1} parent=0 // pred_check_branch
    %11 = sbr.rel (0) target = $region5
  $region4: #{model_forward.1} parent=0 // pred_region
    _
  $region5: #{model_forward.1} parent=0 // pred_fallthru
    _
  // Predicated region
  $region6: #{model_forward.1} parent=0 // pred_check
    _
  $region7: #{model_forward.1} parent=0 // pred_check_branch
    %13 = sbr.rel (0) target = $region9
  $region8: #{model_forward.1} parent=0 // pred_region
    _
  $region9: #{model_forward.1} parent=0 // pred_fallthru
    _
  // Predicated region
  $region10: #{model_forward.1} parent=0 // pred_check
    _
  $region11: #{model_forward.1} parent=0 // pred_check_branch
    %15 = sbr.rel (0) target = $region13
  $region12: #{model_forward.1} parent=0 // pred_region
    _
  $region13: #{model_forward.1} parent=0 // pred_fallthru
    _
  // Predicated region
  $region14: #{model_forward.1} parent=0 // pred_check
    _
  $region15: #{model_forward.1} parent=0 // pred_check_branch
    %17 = sbr.rel (0) target = $region17
  $region16: #{model_forward.1} parent=0 // pred_region
    _
  $region17: #{model_forward.1} parent=0 // pred_fallthru
    _
  // Predicated region
  $region18: #{model_forward.1} parent=0 // pred_check
    _
  $region19: #{model_forward.1} parent=0 // pred_check_branch
    %19 = sbr.rel (0) target = $region21
  $region20: #{model_forward.1} parent=0 // pred_region
    _
  $region21: #{model_forward.1} parent=0 // pred_fallthru
    _
  %v20 = vld [vmem:[%s0] sm:$0xff]
  %v21 = vld [vmem:[%s0 + $0x8] sm:$0xff]
  %v22 = vld [vmem:[%s1] sm:$0x1]
  %v23 = vld [vmem:[%s1 + $0x1] sm:$0x1]
  %v24 = vld [vmem:[%s2] sm:$0xff]
  %v25 = vld [vmem:[%s2 + $0x8] sm:$0xff]
  %v26 = vld [vmem:[%s2 + $0x10] sm:$0xff]
  %v27 = vld [vmem:[%s2 + $0x18] sm:$0xff]
  %v28 = vld [vmem:[%s2 + $0x20] sm:$0xff]
  %v29 = vld [vmem:[%s2 + $0x28] sm:$0xff]
  %v30 = vld [vmem:[%s2 + $0x30] sm:$0xff]
  %v31 = vld [vmem:[%s2 + $0x38] sm:$0xff]
  %v32 = vld [vmem:[%s2 + $0x40] sm:$0xff]
  %v33 = vld [vmem:[%s2 + $0x48] sm:$0xff]
  %v34 = vld [vmem:[%s2 + $0x50] sm:$0xff]
  %v35 = vld [vmem:[%s2 + $0x58] sm:$0xff]
  %v36 = vld [vmem:[%s3] sm:$0xff]
  %v37 = vld [vmem:[%s3 + $0x8] sm:$0xff]
  %v38 = vld [vmem:[%s3 + $0x10] sm:$0xff]
  %v39 = vld [vmem:[%s3 + $0x18] sm:$0xff]
  %v40 = vld [vmem:[%s3 + $0x20] sm:$0xff]
  %v41 = vld [vmem:[%s3 + $0x28] sm:$0xff]
  %v42 = vld [vmem:[%s3 + $0x30] sm:$0xff]
  %v43 = vld [vmem:[%s3 + $0x38] sm:$0xff]
  %v44 = vld [vmem:[%s4] sm:$0x1f]
  %v45 = vlaneseq
  %v46 = vshrl.u32 %v45, 7
  %v47 = vsub.s32 0, %v46
  %v48 = vrot.slane %v44, %v47
  %vm49 = vcmask 261120
  %v51 = vsel %vm49, %v20, 0
  %v54 = vsel %vm49, %v21, 0
  %56 = vmatprep.subr.mxu0 0.0
  %57 = vmatpush1.msra.mxu0 %v24
  %58 = vmatprep.subr.mxu0 0.0
  %59 = vmatpush1.msra.mxu0 %v27
  %60 = vmatprep.subr.mxu0 0.0
  %61 = vmatpush1.msra.mxu0 %v30
  %62 = vmatprep.subr.mxu0 0.0
  %63 = vmatpush1.msra.mxu0 %v33
  %64 = vmatprep.subr.mxu0 0.0
  %65 = vmatpush1.msra.mxu0 0.0
  %66 = vmatprep.subr.mxu0 0.0
  %67 = vmatpush1.msra.mxu0 0.0
  %68 = vmatprep.subr.mxu0 0.0
  %69 = vmatpush1.msra.mxu0 0.0
  %70 = vmatprep.subr.mxu0 0.0
  %71 = vmatpush1.msra.mxu0 0.0
  %72 = vmatprep.subr.mxu0 0.0
  %73 = vmatpush1.msra.mxu0 0.0
  %74 = vmatprep.subr.mxu0 0.0
  %75 = vmatpush1.msra.mxu0 0.0
  %76 = vmatprep.subr.mxu0 0.0
  %77 = vmatpush1.msra.mxu0 0.0
  %78 = vmatprep.subr.mxu0 0.0
  %79 = vmatpush1.msra.mxu0 0.0
  %80 = vmatprep.subr.mxu0 0.0
  %81 = vmatpush1.msra.mxu0 0.0
  %82 = vmatprep.subr.mxu0 0.0
  %83 = vmatpush1.msra.mxu0 0.0
  %84 = vmatprep.subr.mxu0 0.0
  %85 = vmatpush1.msra.mxu0 0.0
  %86 = vmatprep.subr.mxu0 0.0
  %87 = vmatpush1.msra.mxu0 0.0
  %88 = vmatprep.subr.mxu0 0.0
  %89 = vmatpush1.msra.mxu0 0.0
  %90 = vmatprep.subr.mxu0 0.0
  %91 = vmatpush1.msra.mxu0 0.0
  %92 = vmatprep.subr.mxu0 0.0
  %93 = vmatpush1.msra.mxu0 0.0
  %94 = vmatprep.subr.mxu0 0.0
  %95 = vmatpush1.msra.mxu0 0.0
  %96 = vmatprep.subr.mxu0 0.0
  %97 = vmatpush1.msra.mxu0 0.0
  %98 = vmatprep.subr.mxu0 0.0
  %99 = vmatpush1.msra.mxu0 0.0
  %100 = vmatprep.subr.mxu0 0.0
  %101 = vmatpush1.msra.mxu0 0.0
  %102 = vmatprep.subr.mxu0 0.0
  %103 = vmatpush1.msra.mxu0 0.0
  %104 = vmatprep.subr.mxu0 0.0
  %105 = vmatpush1.msra.mxu0 0.0
  %106 = vmatprep.subr.mxu0 0.0
  %107 = vmatpush1.msra.mxu0 0.0
  %108 = vmatprep.subr.mxu0 0.0
  %109 = vmatpush1.msra.mxu0 0.0
  %110 = vmatprep.subr.mxu0 0.0
  %111 = vmatpush1.msra.mxu0 0.0
  %112 = vmatprep.subr.mxu0 0.0
  %113 = vmatpush1.msra.mxu0 0.0
  %114 = vmatprep.subr.mxu0 0.0
  %115 = vmatpush1.msra.mxu0 0.0
  %116 = vmatprep.subr.mxu0 0.0
  %117 = vmatpush1.msra.mxu0 0.0
  %118 = vmatprep.subr.mxu0 0.0
  %119 = vmatpush1.msra.mxu0 0.0
  %120 = vmatprep.mubr.f32.mxu0 0.0
  %121 = vmatmul.mubr.f32.gmra.mrb[0].mxu0 %v51
  %v122 = vpop.f32.mrb[0].mxu0
  %v123 = vadd.f32 %v48, %v122
  %v124 = vpop.f32.mrb[0].mxu0
  %125 = vmatprep.mubr.f32.mxu0 0.0
  %126 = vmatmul.mubr.f32.gmra.mrb[0].mxu0 %v54
  %v127 = vpop.f32.mrb[0].mxu0
  %v128 = vadd.f32 %v48, %v127
  %v129 = vpop.f32.mrb[0].mxu0
  %130 = vdwg.mxu0
  %v133 = vlaneseq
  %v134 = vshrl.u32 %v133, 7
  %v135 = vsub.s32 0, %v134
  %v136 = vrot.slane %v22, %v135
  %v137 = vlaneseq
  %v138 = vshrl.u32 %v137, 7
  %v139 = vsub.s32 0, %v138
  %v140 = vrot.slane %v23, %v139
  %144 = vrot.lane.b32.xlu0 %v123, 96
  %v145 = vpop.permute.xlu0 %144
  %vm146 = vcmask 130048
  %v147 = vsel %vm146, %v123, 0
  %v149 = vsel %vm146, %v145, 0
  %151 = vmatprep.subr.mxu0 0.0
  %152 = vmatpush1.xpose.msra.mxu0 %v149
  %153 = vmatprep.subr.mxu0 0.0
  %154 = vmatpush1.xpose.msra.mxu0 0.0
  %155 = vmatprep.subr.mxu0 0.0
  %156 = vmatpush1.xpose.msra.mxu0 0.0
  %157 = vmatprep.subr.mxu0 0.0
  %158 = vmatpush1.xpose.msra.mxu0 0.0
  %159 = vmatprep.subr.mxu0 0.0
  %160 = vmatpush1.xpose.msra.mxu0 0.0
  %161 = vmatprep.subr.mxu0 0.0
  %162 = vmatpush1.xpose.msra.mxu0 0.0
  %163 = vmatprep.subr.mxu0 0.0
  %164 = vmatpush1.xpose.msra.mxu0 0.0
  %165 = vmatprep.subr.mxu0 0.0
  %166 = vmatpush1.xpose.msra.mxu0 0.0
  %167 = vmatprep.subr.mxu0 0.0
  %168 = vmatpush1.xpose.msra.mxu0 0.0
  %169 = vmatprep.subr.mxu0 0.0
  %170 = vmatpush1.xpose.msra.mxu0 0.0
  %171 = vmatprep.subr.mxu0 0.0
  %172 = vmatpush1.xpose.msra.mxu0 0.0
  %173 = vmatprep.subr.mxu0 0.0
  %174 = vmatpush1.xpose.msra.mxu0 0.0
  %175 = vmatprep.subr.mxu0 0.0
  %176 = vmatpush1.xpose.msra.mxu0 0.0
  %177 = vmatprep.subr.mxu0 0.0
  %178 = vmatpush1.xpose.msra.mxu0 0.0
  %179 = vmatprep.subr.mxu0 0.0
  %180 = vmatpush1.xpose.msra.mxu0 0.0
  %181 = vmatprep.subr.mxu0 0.0
  %182 = vmatpush1.xpose.msra.mxu0 0.0
  %183 = vmatprep.subr.mxu0 0.0
  %184 = vmatpush1.xpose.msra.mxu0 0.0
  %185 = vmatprep.subr.mxu0 0.0
  %186 = vmatpush1.xpose.msra.mxu0 0.0
  %187 = vmatprep.subr.mxu0 0.0
  %188 = vmatpush1.xpose.msra.mxu0 0.0
  %189 = vmatprep.subr.mxu0 0.0
  %190 = vmatpush1.xpose.msra.mxu0 0.0
  %191 = vmatprep.subr.mxu0 0.0
  %192 = vmatpush1.xpose.msra.mxu0 0.0
  %193 = vmatprep.subr.mxu0 0.0
  %194 = vmatpush1.xpose.msra.mxu0 0.0
  %195 = vmatprep.subr.mxu0 0.0
  %196 = vmatpush1.xpose.msra.mxu0 0.0
  %197 = vmatprep.subr.mxu0 0.0
  %198 = vmatpush1.xpose.msra.mxu0 0.0
  %199 = vmatprep.subr.mxu0 0.0
  %200 = vmatpush1.xpose.msra.mxu0 0.0
  %201 = vmatprep.subr.mxu0 0.0
  %202 = vmatpush1.xpose.msra.mxu0 0.0
  %203 = vmatprep.subr.mxu0 0.0
  %204 = vmatpush1.xpose.msra.mxu0 0.0
  %205 = vmatprep.subr.mxu0 0.0
  %206 = vmatpush1.xpose.msra.mxu0 0.0
  %207 = vmatprep.subr.mxu0 0.0
  %208 = vmatpush1.xpose.msra.mxu0 0.0
  %209 = vmatprep.subr.mxu0 0.0
  %210 = vmatpush1.xpose.msra.mxu0 0.0
  %211 = vmatprep.subr.mxu0 0.0
  %212 = vmatpush1.xpose.msra.mxu0 0.0
  %213 = vmatprep.subr.mxu0 0.0
  %214 = vmatpush1.xpose.msra.mxu0 0.0
  %215 = vmatprep.mubr.f32.mxu0 0.0
  %216 = vmatmul.mubr.f32.gmra.mrb[0].mxu0 %v147
  %v217 = vpop.f32.mrb[0].mxu0
  %v218 = vadd.f32 %v136, %v217
  %v219 = vpop.f32.mrb[0].mxu0
  %220 = vdwg.mxu0
  %222 = vrot.lane.b32.xlu0 %v128, 96
  %v223 = vpop.permute.xlu0 %222
  %v224 = vsel %vm146, %v128, 0
  %v226 = vsel %vm146, %v223, 0
  %228 = vmatprep.subr.mxu0 0.0
  %229 = vmatpush1.xpose.msra.mxu0 %v226
  %230 = vmatprep.subr.mxu0 0.0
  %231 = vmatpush1.xpose.msra.mxu0 0.0
  %232 = vmatprep.subr.mxu0 0.0
  %233 = vmatpush1.xpose.msra.mxu0 0.0
  %234 = vmatprep.subr.mxu0 0.0
  %235 = vmatpush1.xpose.msra.mxu0 0.0
  %236 = vmatprep.subr.mxu0 0.0
  %237 = vmatpush1.xpose.msra.mxu0 0.0
  %238 = vmatprep.subr.mxu0 0.0
  %239 = vmatpush1.xpose.msra.mxu0 0.0
  %240 = vmatprep.subr.mxu0 0.0
  %241 = vmatpush1.xpose.msra.mxu0 0.0
  %242 = vmatprep.subr.mxu0 0.0
  %243 = vmatpush1.xpose.msra.mxu0 0.0
  %244 = vmatprep.subr.mxu0 0.0
  %245 = vmatpush1.xpose.msra.mxu0 0.0
  %246 = vmatprep.subr.mxu0 0.0
  %247 = vmatpush1.xpose.msra.mxu0 0.0
  %248 = vmatprep.subr.mxu0 0.0
  %249 = vmatpush1.xpose.msra.mxu0 0.0
  %250 = vmatprep.subr.mxu0 0.0
  %251 = vmatpush1.xpose.msra.mxu0 0.0
  %252 = vmatprep.subr.mxu0 0.0
  %253 = vmatpush1.xpose.msra.mxu0 0.0
  %254 = vmatprep.subr.mxu0 0.0
  %255 = vmatpush1.xpose.msra.mxu0 0.0
  %256 = vmatprep.subr.mxu0 0.0
  %257 = vmatpush1.xpose.msra.mxu0 0.0
  %258 = vmatprep.subr.mxu0 0.0
  %259 = vmatpush1.xpose.msra.mxu0 0.0
  %260 = vmatprep.subr.mxu0 0.0
  %261 = vmatpush1.xpose.msra.mxu0 0.0
  %262 = vmatprep.subr.mxu0 0.0
  %263 = vmatpush1.xpose.msra.mxu0 0.0
  %264 = vmatprep.subr.mxu0 0.0
  %265 = vmatpush1.xpose.msra.mxu0 0.0
  %266 = vmatprep.subr.mxu0 0.0
  %267 = vmatpush1.xpose.msra.mxu0 0.0
  %268 = vmatprep.subr.mxu0 0.0
  %269 = vmatpush1.xpose.msra.mxu0 0.0
  %270 = vmatprep.subr.mxu0 0.0
  %271 = vmatpush1.xpose.msra.mxu0 0.0
  %272 = vmatprep.subr.mxu0 0.0
  %273 = vmatpush1.xpose.msra.mxu0 0.0
  %274 = vmatprep.subr.mxu0 0.0
  %275 = vmatpush1.xpose.msra.mxu0 0.0
  %276 = vmatprep.subr.mxu0 0.0
  %277 = vmatpush1.xpose.msra.mxu0 0.0
  %278 = vmatprep.subr.mxu0 0.0
  %279 = vmatpush1.xpose.msra.mxu0 0.0
  %280 = vmatprep.subr.mxu0 0.0
  %281 = vmatpush1.xpose.msra.mxu0 0.0
  %282 = vmatprep.subr.mxu0 0.0
  %283 = vmatpush1.xpose.msra.mxu0 0.0
  %284 = vmatprep.subr.mxu0 0.0
  %285 = vmatpush1.xpose.msra.mxu0 0.0
  %286 = vmatprep.subr.mxu0 0.0
  %287 = vmatpush1.xpose.msra.mxu0 0.0
  %288 = vmatprep.subr.mxu0 0.0
  %289 = vmatpush1.xpose.msra.mxu0 0.0
  %290 = vmatprep.subr.mxu0 0.0
  %291 = vmatpush1.xpose.msra.mxu0 0.0
  %292 = vmatprep.mubr.f32.mxu0 0.0
  %293 = vmatmul.mubr.f32.gmra.mrb[0].mxu0 %v224
  %v294 = vpop.f32.mrb[0].mxu0
  %v295 = vadd.f32 %v140, %v294
  %v296 = vpop.f32.mrb[0].mxu0
  %297 = vdwg.mxu0
  %vm298 = vcmask 64512
  %v299 = vsel %vm298, %v218, -inf
  %300 = vmax.xlane.f32.xlu0 %v299
  %v301 = vpop.xlane.xlu0 %300
  %v302 = vsel %vm298, %v295, -inf
  %303 = vmax.xlane.f32.xlu0 %v302
  %v304 = vpop.xlane.xlu0 %303
  %v305 = vsub.f32 %v218, %v301
  %v306 = vsub.f32 %v295, %v304
  %v307 = vmul.f32 %v305, 1.442695
  %v308 = vpow.pop %v307
  %v309 = vmul.f32 %v306, 1.442695
  %v310 = vpow.pop %v309
  %v311 = vsel %vm298, %v308, 0.0
  %312 = vadd.xlane.f32.xlu0 %v311
  %v313 = vpop.xlane.xlu0 %312
  %v314 = vsel %vm298, %v310, 0.0
  %315 = vadd.xlane.f32.xlu0 %v314
  %v316 = vpop.xlane.xlu0 %315
  %v317 = vrcp.pop %v313
  %v318 = vrcp.pop %v316
  %v319 = vmul.f32 %v308, %v317
  %v320 = vmul.f32 %v310, %v318
  %321 = vrot.lane.b32.xlu0 %v123, 64
  %v322 = vpop.permute.xlu0 %321
  %v325 = vsel %vm298, %v319, 0
  %327 = vmatprep.subr.mxu0 0.0
  %328 = vmatpush1.msra.mxu0 %v322
  %329 = vmatprep.subr.mxu0 0.0
  %330 = vmatpush1.msra.mxu0 0.0
  %331 = vmatprep.subr.mxu0 0.0
  %332 = vmatpush1.msra.mxu0 0.0
  %333 = vmatprep.subr.mxu0 0.0
  %334 = vmatpush1.msra.mxu0 0.0
  %335 = vmatprep.subr.mxu0 0.0
  %336 = vmatpush1.msra.mxu0 0.0
  %337 = vmatprep.subr.mxu0 0.0
  %338 = vmatpush1.msra.mxu0 0.0
  %339 = vmatprep.subr.mxu0 0.0
  %340 = vmatpush1.msra.mxu0 0.0
  %341 = vmatprep.subr.mxu0 0.0
  %342 = vmatpush1.msra.mxu0 0.0
  %343 = vmatprep.subr.mxu0 0.0
  %344 = vmatpush1.msra.mxu0 0.0
  %345 = vmatprep.subr.mxu0 0.0
  %346 = vmatpush1.msra.mxu0 0.0
  %347 = vmatprep.subr.mxu0 0.0
  %348 = vmatpush1.msra.mxu0 0.0
  %349 = vmatprep.subr.mxu0 0.0
  %350 = vmatpush1.msra.mxu0 0.0
  %351 = vmatprep.subr.mxu0 0.0
  %352 = vmatpush1.msra.mxu0 0.0
  %353 = vmatprep.subr.mxu0 0.0
  %354 = vmatpush1.msra.mxu0 0.0
  %355 = vmatprep.subr.mxu0 0.0
  %356 = vmatpush1.msra.mxu0 0.0
  %357 = vmatprep.subr.mxu0 0.0
  %358 = vmatpush1.msra.mxu0 0.0
  %359 = vmatprep.subr.mxu0 0.0
  %360 = vmatpush1.msra.mxu0 0.0
  %361 = vmatprep.subr.mxu0 0.0
  %362 = vmatpush1.msra.mxu0 0.0
  %363 = vmatprep.subr.mxu0 0.0
  %364 = vmatpush1.msra.mxu0 0.0
  %365 = vmatprep.subr.mxu0 0.0
  %366 = vmatpush1.msra.mxu0 0.0
  %367 = vmatprep.subr.mxu0 0.0
  %368 = vmatpush1.msra.mxu0 0.0
  %369 = vmatprep.subr.mxu0 0.0
  %370 = vmatpush1.msra.mxu0 0.0
  %371 = vmatprep.subr.mxu0 0.0
  %372 = vmatpush1.msra.mxu0 0.0
  %373 = vmatprep.subr.mxu0 0.0
  %374 = vmatpush1.msra.mxu0 0.0
  %375 = vmatprep.subr.mxu0 0.0
  %376 = vmatpush1.msra.mxu0 0.0
  %377 = vmatprep.subr.mxu0 0.0
  %378 = vmatpush1.msra.mxu0 0.0
  %379 = vmatprep.subr.mxu0 0.0
  %380 = vmatpush1.msra.mxu0 0.0
  %381 = vmatprep.subr.mxu0 0.0
  %382 = vmatpush1.msra.mxu0 0.0
  %383 = vmatprep.subr.mxu0 0.0
  %384 = vmatpush1.msra.mxu0 0.0
  %385 = vmatprep.subr.mxu0 0.0
  %386 = vmatpush1.msra.mxu0 0.0
  %387 = vmatprep.subr.mxu0 0.0
  %388 = vmatpush1.msra.mxu0 0.0
  %389 = vmatprep.subr.mxu0 0.0
  %390 = vmatpush1.msra.mxu0 0.0
  %391 = vmatprep.mubr.f32.mxu0 0.0
  %392 = vmatmul.mubr.f32.gmra.mrb[0].mxu0 %v325
  %v393 = vpop.f32.mrb[0].mxu0
  %v394 = vadd.f32 0.0, %v393
  %v395 = vpop.f32.mrb[0].mxu0
  %396 = vdwg.mxu0
  %397 = vrot.lane.b32.xlu0 %v128, 64
  %v398 = vpop.permute.xlu0 %397
  %v401 = vsel %vm298, %v320, 0
  %403 = vmatprep.subr.mxu0 0.0
  %404 = vmatpush1.msra.mxu0 %v398
  %405 = vmatprep.subr.mxu0 0.0
  %406 = vmatpush1.msra.mxu0 0.0
  %407 = vmatprep.subr.mxu0 0.0
  %408 = vmatpush1.msra.mxu0 0.0
  %409 = vmatprep.subr.mxu0 0.0
  %410 = vmatpush1.msra.mxu0 0.0
  %411 = vmatprep.subr.mxu0 0.0
  %412 = vmatpush1.msra.mxu0 0.0
  %413 = vmatprep.subr.mxu0 0.0
  %414 = vmatpush1.msra.mxu0 0.0
  %415 = vmatprep.subr.mxu0 0.0
  %416 = vmatpush1.msra.mxu0 0.0
  %417 = vmatprep.subr.mxu0 0.0
  %418 = vmatpush1.msra.mxu0 0.0
  %419 = vmatprep.subr.mxu0 0.0
  %420 = vmatpush1.msra.mxu0 0.0
  %421 = vmatprep.subr.mxu0 0.0
  %422 = vmatpush1.msra.mxu0 0.0
  %423 = vmatprep.subr.mxu0 0.0
  %424 = vmatpush1.msra.mxu0 0.0
  %425 = vmatprep.subr.mxu0 0.0
  %426 = vmatpush1.msra.mxu0 0.0
  %427 = vmatprep.subr.mxu0 0.0
  %428 = vmatpush1.msra.mxu0 0.0
  %429 = vmatprep.subr.mxu0 0.0
  %430 = vmatpush1.msra.mxu0 0.0
  %431 = vmatprep.subr.mxu0 0.0
  %432 = vmatpush1.msra.mxu0 0.0
  %433 = vmatprep.subr.mxu0 0.0
  %434 = vmatpush1.msra.mxu0 0.0
  %435 = vmatprep.subr.mxu0 0.0
  %436 = vmatpush1.msra.mxu0 0.0
  %437 = vmatprep.subr.mxu0 0.0
  %438 = vmatpush1.msra.mxu0 0.0
  %439 = vmatprep.subr.mxu0 0.0
  %440 = vmatpush1.msra.mxu0 0.0
  %441 = vmatprep.subr.mxu0 0.0
  %442 = vmatpush1.msra.mxu0 0.0
  %443 = vmatprep.subr.mxu0 0.0
  %444 = vmatpush1.msra.mxu0 0.0
  %445 = vmatprep.subr.mxu0 0.0
  %446 = vmatpush1.msra.mxu0 0.0
  %447 = vmatprep.subr.mxu0 0.0
  %448 = vmatpush1.msra.mxu0 0.0
  %449 = vmatprep.subr.mxu0 0.0
  %450 = vmatpush1.msra.mxu0 0.0
  %451 = vmatprep.subr.mxu0 0.0
  %452 = vmatpush1.msra.mxu0 0.0
  %453 = vmatprep.subr.mxu0 0.0
  %454 = vmatpush1.msra.mxu0 0.0
  %455 = vmatprep.subr.mxu0 0.0
  %456 = vmatpush1.msra.mxu0 0.0
  %457 = vmatprep.subr.mxu0 0.0
  %458 = vmatpush1.msra.mxu0 0.0
  %459 = vmatprep.subr.mxu0 0.0
  %460 = vmatpush1.msra.mxu0 0.0
  %461 = vmatprep.subr.mxu0 0.0
  %462 = vmatpush1.msra.mxu0 0.0
  %463 = vmatprep.subr.mxu0 0.0
  %464 = vmatpush1.msra.mxu0 0.0
  %465 = vmatprep.subr.mxu0 0.0
  %466 = vmatpush1.msra.mxu0 0.0
  %467 = vmatprep.mubr.f32.mxu0 0.0
  %468 = vmatmul.mubr.f32.gmra.mrb[0].mxu0 %v401
  %v469 = vpop.f32.mrb[0].mxu0
  %v470 = vadd.f32 0.0, %v469
  %v471 = vpop.f32.mrb[0].mxu0
  %472 = vdwg.mxu0
  %473 = vrot.lane.b32.xlu0 %v123, 112
  %v474 = vpop.permute.xlu0 %473
  %475 = vrot.lane.b32.xlu0 %v123, 80
  %v476 = vpop.permute.xlu0 %475
  %v477 = vsel %vm146, %v474, 0
  %v479 = vsel %vm146, %v476, 0
  %481 = vmatprep.subr.mxu0 0.0
  %482 = vmatpush1.xpose.msra.mxu0 %v479
  %483 = vmatprep.subr.mxu0 0.0
  %484 = vmatpush1.xpose.msra.mxu0 0.0
  %485 = vmatprep.subr.mxu0 0.0
  %486 = vmatpush1.xpose.msra.mxu0 0.0
  %487 = vmatprep.subr.mxu0 0.0
  %488 = vmatpush1.xpose.msra.mxu0 0.0
  %489 = vmatprep.subr.mxu0 0.0
  %490 = vmatpush1.xpose.msra.mxu0 0.0
  %491 = vmatprep.subr.mxu0 0.0
  %492 = vmatpush1.xpose.msra.mxu0 0.0
  %493 = vmatprep.subr.mxu0 0.0
  %494 = vmatpush1.xpose.msra.mxu0 0.0
  %495 = vmatprep.subr.mxu0 0.0
  %496 = vmatpush1.xpose.msra.mxu0 0.0
  %497 = vmatprep.subr.mxu0 0.0
  %498 = vmatpush1.xpose.msra.mxu0 0.0
  %499 = vmatprep.subr.mxu0 0.0
  %500 = vmatpush1.xpose.msra.mxu0 0.0
  %501 = vmatprep.subr.mxu0 0.0
  %502 = vmatpush1.xpose.msra.mxu0 0.0
  %503 = vmatprep.subr.mxu0 0.0
  %504 = vmatpush1.xpose.msra.mxu0 0.0
  %505 = vmatprep.subr.mxu0 0.0
  %506 = vmatpush1.xpose.msra.mxu0 0.0
  %507 = vmatprep.subr.mxu0 0.0
  %508 = vmatpush1.xpose.msra.mxu0 0.0
  %509 = vmatprep.subr.mxu0 0.0
  %510 = vmatpush1.xpose.msra.mxu0 0.0
  %511 = vmatprep.subr.mxu0 0.0
  %512 = vmatpush1.xpose.msra.mxu0 0.0
  %513 = vmatprep.subr.mxu0 0.0
  %514 = vmatpush1.xpose.msra.mxu0 0.0
  %515 = vmatprep.subr.mxu0 0.0
  %516 = vmatpush1.xpose.msra.mxu0 0.0
  %517 = vmatprep.subr.mxu0 0.0
  %518 = vmatpush1.xpose.msra.mxu0 0.0
  %519 = vmatprep.subr.mxu0 0.0
  %520 = vmatpush1.xpose.msra.mxu0 0.0
  %521 = vmatprep.subr.mxu0 0.0
  %522 = vmatpush1.xpose.msra.mxu0 0.0
  %523 = vmatprep.subr.mxu0 0.0
  %524 = vmatpush1.xpose.msra.mxu0 0.0
  %525 = vmatprep.subr.mxu0 0.0
  %526 = vmatpush1.xpose.msra.mxu0 0.0
  %527 = vmatprep.subr.mxu0 0.0
  %528 = vmatpush1.xpose.msra.mxu0 0.0
  %529 = vmatprep.subr.mxu0 0.0
  %530 = vmatpush1.xpose.msra.mxu0 0.0
  %531 = vmatprep.subr.mxu0 0.0
  %532 = vmatpush1.xpose.msra.mxu0 0.0
  %533 = vmatprep.subr.mxu0 0.0
  %534 = vmatpush1.xpose.msra.mxu0 0.0
  %535 = vmatprep.subr.mxu0 0.0
  %536 = vmatpush1.xpose.msra.mxu0 0.0
  %537 = vmatprep.subr.mxu0 0.0
  %538 = vmatpush1.xpose.msra.mxu0 0.0
  %539 = vmatprep.subr.mxu0 0.0
  %540 = vmatpush1.xpose.msra.mxu0 0.0
  %541 = vmatprep.subr.mxu0 0.0
  %542 = vmatpush1.xpose.msra.mxu0 0.0
  %543 = vmatprep.subr.mxu0 0.0
  %544 = vmatpush1.xpose.msra.mxu0 0.0
  %545 = vmatprep.mubr.f32.mxu0 0.0
  %546 = vmatmul.mubr.f32.gmra.mrb[0].mxu0 %v477
  %v547 = vpop.f32.mrb[0].mxu0
  %v548 = vadd.f32 %v136, %v547
  %v549 = vpop.f32.mrb[0].mxu0
  %550 = vdwg.mxu0
  %551 = vrot.lane.b32.xlu0 %v128, 112
  %v552 = vpop.permute.xlu0 %551
  %553 = vrot.lane.b32.xlu0 %v128, 80
  %v554 = vpop.permute.xlu0 %553
  %v555 = vsel %vm146, %v552, 0
  %v557 = vsel %vm146, %v554, 0
  %559 = vmatprep.subr.mxu0 0.0
  %560 = vmatpush1.xpose.msra.mxu0 %v557
  %561 = vmatprep.subr.mxu0 0.0
  %562 = vmatpush1.xpose.msra.mxu0 0.0
  %563 = vmatprep.subr.mxu0 0.0
  %564 = vmatpush1.xpose.msra.mxu0 0.0
  %565 = vmatprep.subr.mxu0 0.0
  %566 = vmatpush1.xpose.msra.mxu0 0.0
  %567 = vmatprep.subr.mxu0 0.0
  %568 = vmatpush1.xpose.msra.mxu0 0.0
  %569 = vmatprep.subr.mxu0 0.0
  %570 = vmatpush1.xpose.msra.mxu0 0.0
  %571 = vmatprep.subr.mxu0 0.0
  %572 = vmatpush1.xpose.msra.mxu0 0.0
  %573 = vmatprep.subr.mxu0 0.0
  %574 = vmatpush1.xpose.msra.mxu0 0.0
  %575 = vmatprep.subr.mxu0 0.0
  %576 = vmatpush1.xpose.msra.mxu0 0.0
  %577 = vmatprep.subr.mxu0 0.0
  %578 = vmatpush1.xpose.msra.mxu0 0.0
  %579 = vmatprep.subr.mxu0 0.0
  %580 = vmatpush1.xpose.msra.mxu0 0.0
  %581 = vmatprep.subr.mxu0 0.0
  %582 = vmatpush1.xpose.msra.mxu0 0.0
  %583 = vmatprep.subr.mxu0 0.0
  %584 = vmatpush1.xpose.msra.mxu0 0.0
  %585 = vmatprep.subr.mxu0 0.0
  %586 = vmatpush1.xpose.msra.mxu0 0.0
  %587 = vmatprep.subr.mxu0 0.0
  %588 = vmatpush1.xpose.msra.mxu0 0.0
  %589 = vmatprep.subr.mxu0 0.0
  %590 = vmatpush1.xpose.msra.mxu0 0.0
  %591 = vmatprep.subr.mxu0 0.0
  %592 = vmatpush1.xpose.msra.mxu0 0.0
  %593 = vmatprep.subr.mxu0 0.0
  %594 = vmatpush1.xpose.msra.mxu0 0.0
  %595 = vmatprep.subr.mxu0 0.0
  %596 = vmatpush1.xpose.msra.mxu0 0.0
  %597 = vmatprep.subr.mxu0 0.0
  %598 = vmatpush1.xpose.msra.mxu0 0.0
  %599 = vmatprep.subr.mxu0 0.0
  %600 = vmatpush1.xpose.msra.mxu0 0.0
  %601 = vmatprep.subr.mxu0 0.0
  %602 = vmatpush1.xpose.msra.mxu0 0.0
  %603 = vmatprep.subr.mxu0 0.0
  %604 = vmatpush1.xpose.msra.mxu0 0.0
  %605 = vmatprep.subr.mxu0 0.0
  %606 = vmatpush1.xpose.msra.mxu0 0.0
  %607 = vmatprep.subr.mxu0 0.0
  %608 = vmatpush1.xpose.msra.mxu0 0.0
  %609 = vmatprep.subr.mxu0 0.0
  %610 = vmatpush1.xpose.msra.mxu0 0.0
  %611 = vmatprep.subr.mxu0 0.0
  %612 = vmatpush1.xpose.msra.mxu0 0.0
  %613 = vmatprep.subr.mxu0 0.0
  %614 = vmatpush1.xpose.msra.mxu0 0.0
  %615 = vmatprep.subr.mxu0 0.0
  %616 = vmatpush1.xpose.msra.mxu0 0.0
  %617 = vmatprep.subr.mxu0 0.0
  %618 = vmatpush1.xpose.msra.mxu0 0.0
  %619 = vmatprep.subr.mxu0 0.0
  %620 = vmatpush1.xpose.msra.mxu0 0.0
  %621 = vmatprep.subr.mxu0 0.0
  %622 = vmatpush1.xpose.msra.mxu0 0.0
  %623 = vmatprep.mubr.f32.mxu0 0.0
  %624 = vmatmul.mubr.f32.gmra.mrb[0].mxu0 %v555
  %v625 = vpop.f32.mrb[0].mxu0
  %v626 = vadd.f32 %v140, %v625
  %v627 = vpop.f32.mrb[0].mxu0
  %628 = vdwg.mxu0
  %v629 = vsel %vm298, %v548, -inf
  %630 = vmax.xlane.f32.xlu0 %v629
  %v631 = vpop.xlane.xlu0 %630
  %v632 = vsel %vm298, %v626, -inf
  %633 = vmax.xlane.f32.xlu0 %v632
  %v634 = vpop.xlane.xlu0 %633
  %v635 = vsub.f32 %v548, %v631
  %v636 = vsub.f32 %v626, %v634
  %v637 = vmul.f32 %v635, 1.442695
  %v638 = vpow.pop %v637
  %v639 = vmul.f32 %v636, 1.442695
  %v640 = vpow.pop %v639
  %v641 = vsel %vm298, %v638, 0.0
  %642 = vadd.xlane.f32.xlu0 %v641
  %v643 = vpop.xlane.xlu0 %642
  %v644 = vsel %vm298, %v640, 0.0
  %645 = vadd.xlane.f32.xlu0 %v644
  %v646 = vpop.xlane.xlu0 %645
  %v647 = vrcp.pop %v643
  %v648 = vrcp.pop %v646
  %v649 = vmul.f32 %v638, %v647
  %v650 = vmul.f32 %v640, %v648
  %651 = vrot.lane.b32.xlu0 %v123, 48
  %v652 = vpop.permute.xlu0 %651
  %v655 = vsel %vm298, %v649, 0
  %657 = vmatprep.subr.mxu0 0.0
  %658 = vmatpush1.msra.mxu0 %v652
  %659 = vmatprep.subr.mxu0 0.0
  %660 = vmatpush1.msra.mxu0 0.0
  %661 = vmatprep.subr.mxu0 0.0
  %662 = vmatpush1.msra.mxu0 0.0
  %663 = vmatprep.subr.mxu0 0.0
  %664 = vmatpush1.msra.mxu0 0.0
  %665 = vmatprep.subr.mxu0 0.0
  %666 = vmatpush1.msra.mxu0 0.0
  %667 = vmatprep.subr.mxu0 0.0
  %668 = vmatpush1.msra.mxu0 0.0
  %669 = vmatprep.subr.mxu0 0.0
  %670 = vmatpush1.msra.mxu0 0.0
  %671 = vmatprep.subr.mxu0 0.0
  %672 = vmatpush1.msra.mxu0 0.0
  %673 = vmatprep.subr.mxu0 0.0
  %674 = vmatpush1.msra.mxu0 0.0
  %675 = vmatprep.subr.mxu0 0.0
  %676 = vmatpush1.msra.mxu0 0.0
  %677 = vmatprep.subr.mxu0 0.0
  %678 = vmatpush1.msra.mxu0 0.0
  %679 = vmatprep.subr.mxu0 0.0
  %680 = vmatpush1.msra.mxu0 0.0
  %681 = vmatprep.subr.mxu0 0.0
  %682 = vmatpush1.msra.mxu0 0.0
  %683 = vmatprep.subr.mxu0 0.0
  %684 = vmatpush1.msra.mxu0 0.0
  %685 = vmatprep.subr.mxu0 0.0
  %686 = vmatpush1.msra.mxu0 0.0
  %687 = vmatprep.subr.mxu0 0.0
  %688 = vmatpush1.msra.mxu0 0.0
  %689 = vmatprep.subr.mxu0 0.0
  %690 = vmatpush1.msra.mxu0 0.0
  %691 = vmatprep.subr.mxu0 0.0
  %692 = vmatpush1.msra.mxu0 0.0
  %693 = vmatprep.subr.mxu0 0.0
  %694 = vmatpush1.msra.mxu0 0.0
  %695 = vmatprep.subr.mxu0 0.0
  %696 = vmatpush1.msra.mxu0 0.0
  %697 = vmatprep.subr.mxu0 0.0
  %698 = vmatpush1.msra.mxu0 0.0
  %699 = vmatprep.subr.mxu0 0.0
  %700 = vmatpush1.msra.mxu0 0.0
  %701 = vmatprep.subr.mxu0 0.0
  %702 = vmatpush1.msra.mxu0 0.0
  %703 = vmatprep.subr.mxu0 0.0
  %704 = vmatpush1.msra.mxu0 0.0
  %705 = vmatprep.subr.mxu0 0.0
  %706 = vmatpush1.msra.mxu0 0.0
  %707 = vmatprep.subr.mxu0 0.0
  %708 = vmatpush1.msra.mxu0 0.0
  %709 = vmatprep.subr.mxu0 0.0
  %710 = vmatpush1.msra.mxu0 0.0
  %711 = vmatprep.subr.mxu0 0.0
  %712 = vmatpush1.msra.mxu0 0.0
  %713 = vmatprep.subr.mxu0 0.0
  %714 = vmatpush1.msra.mxu0 0.0
  %715 = vmatprep.subr.mxu0 0.0
  %716 = vmatpush1.msra.mxu0 0.0
  %717 = vmatprep.subr.mxu0 0.0
  %718 = vmatpush1.msra.mxu0 0.0
  %719 = vmatprep.subr.mxu0 0.0
  %720 = vmatpush1.msra.mxu0 0.0
  %721 = vmatprep.mubr.f32.mxu0 0.0
  %722 = vmatmul.mubr.f32.gmra.mrb[0].mxu0 %v655
  %v723 = vpop.f32.mrb[0].mxu0
  %v724 = vadd.f32 0.0, %v723
  %v725 = vpop.f32.mrb[0].mxu0
  %726 = vdwg.mxu0
  %727 = vrot.lane.b32.xlu0 %v128, 48
  %v728 = vpop.permute.xlu0 %727
  %v731 = vsel %vm298, %v650, 0
  %733 = vmatprep.subr.mxu0 0.0
  %734 = vmatpush1.msra.mxu0 %v728
  %735 = vmatprep.subr.mxu0 0.0
  %736 = vmatpush1.msra.mxu0 0.0
  %737 = vmatprep.subr.mxu0 0.0
  %738 = vmatpush1.msra.mxu0 0.0
  %739 = vmatprep.subr.mxu0 0.0
  %740 = vmatpush1.msra.mxu0 0.0
  %741 = vmatprep.subr.mxu0 0.0
  %742 = vmatpush1.msra.mxu0 0.0
  %743 = vmatprep.subr.mxu0 0.0
  %744 = vmatpush1.msra.mxu0 0.0
  %745 = vmatprep.subr.mxu0 0.0
  %746 = vmatpush1.msra.mxu0 0.0
  %747 = vmatprep.subr.mxu0 0.0
  %748 = vmatpush1.msra.mxu0 0.0
  %749 = vmatprep.subr.mxu0 0.0
  %750 = vmatpush1.msra.mxu0 0.0
  %751 = vmatprep.subr.mxu0 0.0
  %752 = vmatpush1.msra.mxu0 0.0
  %753 = vmatprep.subr.mxu0 0.0
  %754 = vmatpush1.msra.mxu0 0.0
  %755 = vmatprep.subr.mxu0 0.0
  %756 = vmatpush1.msra.mxu0 0.0
  %757 = vmatprep.subr.mxu0 0.0
  %758 = vmatpush1.msra.mxu0 0.0
  %759 = vmatprep.subr.mxu0 0.0
  %760 = vmatpush1.msra.mxu0 0.0
  %761 = vmatprep.subr.mxu0 0.0
  %762 = vmatpush1.msra.mxu0 0.0
  %763 = vmatprep.subr.mxu0 0.0
  %764 = vmatpush1.msra.mxu0 0.0
  %765 = vmatprep.subr.mxu0 0.0
  %766 = vmatpush1.msra.mxu0 0.0
  %767 = vmatprep.subr.mxu0 0.0
  %768 = vmatpush1.msra.mxu0 0.0
  %769 = vmatprep.subr.mxu0 0.0
  %770 = vmatpush1.msra.mxu0 0.0
  %771 = vmatprep.subr.mxu0 0.0
  %772 = vmatpush1.msra.mxu0 0.0
  %773 = vmatprep.subr.mxu0 0.0
  %774 = vmatpush1.msra.mxu0 0.0
  %775 = vmatprep.subr.mxu0 0.0
  %776 = vmatpush1.msra.mxu0 0.0
  %777 = vmatprep.subr.mxu0 0.0
  %778 = vmatpush1.msra.mxu0 0.0
  %779 = vmatprep.subr.mxu0 0.0
  %780 = vmatpush1.msra.mxu0 0.0
  %781 = vmatprep.subr.mxu0 0.0
  %782 = vmatpush1.msra.mxu0 0.0
  %783 = vmatprep.subr.mxu0 0.0
  %784 = vmatpush1.msra.mxu0 0.0
  %785 = vmatprep.subr.mxu0 0.0
  %786 = vmatpush1.msra.mxu0 0.0
  %787 = vmatprep.subr.mxu0 0.0
  %788 = vmatpush1.msra.mxu0 0.0
  %789 = vmatprep.subr.mxu0 0.0
  %790 = vmatpush1.msra.mxu0 0.0
  %791 = vmatprep.subr.mxu0 0.0
  %792 = vmatpush1.msra.mxu0 0.0
  %793 = vmatprep.subr.mxu0 0.0
  %794 = vmatpush1.msra.mxu0 0.0
  %795 = vmatprep.subr.mxu0 0.0
  %796 = vmatpush1.msra.mxu0 0.0
  %797 = vmatprep.mubr.f32.mxu0 0.0
  %798 = vmatmul.mubr.f32.gmra.mrb[0].mxu0 %v731
  %v799 = vpop.f32.mrb[0].mxu0
  %v800 = vadd.f32 0.0, %v799
  %v801 = vpop.f32.mrb[0].mxu0
  %802 = vdwg.mxu0
  %805 = vrot.lane.b32.xlu0 %v30, 32
  %v806 = vpop.permute.xlu0 %805
  %807 = vrot.lane.b32.xlu0 %v33, 32
  %v808 = vpop.permute.xlu0 %807
  %v812 = vsel %vm146, %v724, 0
  %v815 = vsel %vm146, %v800, 0
  %817 = vmatprep.subr.mxu0 0.0
  %818 = vmatpush1.msra.mxu0 %v806
  %819 = vmatprep.subr.mxu0 0.0
  %820 = vmatpush1.msra.mxu0 %v808
  %821 = vmatprep.subr.mxu0 0.0
  %822 = vmatpush1.msra.mxu0 0.0
  %823 = vmatprep.subr.mxu0 0.0
  %824 = vmatpush1.msra.mxu0 0.0
  %825 = vmatprep.subr.mxu0 0.0
  %826 = vmatpush1.msra.mxu0 0.0
  %827 = vmatprep.subr.mxu0 0.0
  %828 = vmatpush1.msra.mxu0 0.0
  %829 = vmatprep.subr.mxu0 0.0
  %830 = vmatpush1.msra.mxu0 0.0
  %831 = vmatprep.subr.mxu0 0.0
  %832 = vmatpush1.msra.mxu0 0.0
  %833 = vmatprep.subr.mxu0 0.0
  %834 = vmatpush1.msra.mxu0 0.0
  %835 = vmatprep.subr.mxu0 0.0
  %836 = vmatpush1.msra.mxu0 0.0
  %837 = vmatprep.subr.mxu0 0.0
  %838 = vmatpush1.msra.mxu0 0.0
  %839 = vmatprep.subr.mxu0 0.0
  %840 = vmatpush1.msra.mxu0 0.0
  %841 = vmatprep.subr.mxu0 0.0
  %842 = vmatpush1.msra.mxu0 0.0
  %843 = vmatprep.subr.mxu0 0.0
  %844 = vmatpush1.msra.mxu0 0.0
  %845 = vmatprep.subr.mxu0 0.0
  %846 = vmatpush1.msra.mxu0 0.0
  %847 = vmatprep.subr.mxu0 0.0
  %848 = vmatpush1.msra.mxu0 0.0
  %849 = vmatprep.subr.mxu0 0.0
  %850 = vmatpush1.msra.mxu0 0.0
  %851 = vmatprep.subr.mxu0 0.0
  %852 = vmatpush1.msra.mxu0 0.0
  %853 = vmatprep.subr.mxu0 0.0
  %854 = vmatpush1.msra.mxu0 0.0
  %855 = vmatprep.subr.mxu0 0.0
  %856 = vmatpush1.msra.mxu0 0.0
  %857 = vmatprep.subr.mxu0 0.0
  %858 = vmatpush1.msra.mxu0 0.0
  %859 = vmatprep.subr.mxu0 0.0
  %860 = vmatpush1.msra.mxu0 0.0
  %861 = vmatprep.subr.mxu0 0.0
  %862 = vmatpush1.msra.mxu0 0.0
  %863 = vmatprep.subr.mxu0 0.0
  %864 = vmatpush1.msra.mxu0 0.0
  %865 = vmatprep.subr.mxu0 0.0
  %866 = vmatpush1.msra.mxu0 0.0
  %867 = vmatprep.subr.mxu0 0.0
  %868 = vmatpush1.msra.mxu0 0.0
  %869 = vmatprep.subr.mxu0 0.0
  %870 = vmatpush1.msra.mxu0 0.0
  %871 = vmatprep.subr.mxu0 0.0
  %872 = vmatpush1.msra.mxu0 0.0
  %873 = vmatprep.subr.mxu0 0.0
  %874 = vmatpush1.msra.mxu0 0.0
  %875 = vmatprep.subr.mxu0 0.0
  %876 = vmatpush1.msra.mxu0 0.0
  %877 = vmatprep.subr.mxu0 0.0
  %878 = vmatpush1.msra.mxu0 0.0
  %879 = vmatprep.subr.mxu0 0.0
  %880 = vmatpush1.msra.mxu0 0.0
  %881 = vmatprep.mubr.f32.mxu0 0.0
  %882 = vmatmul.mubr.f32.gmra.mrb[0].mxu0 %v812
  %v883 = vpop.f32.mrb[0].mxu0
  %v884 = vadd.f32 0.0, %v883
  %v885 = vpop.f32.mrb[0].mxu0
  %886 = vmatprep.mubr.f32.mxu0 0.0
  %887 = vmatmul.mubr.f32.gmra.mrb[0].mxu0 %v815
  %v888 = vpop.f32.mrb[0].mxu0
  %v889 = vadd.f32 0.0, %v888
  %v890 = vpop.f32.mrb[0].mxu0
  %891 = vdwg.mxu0
  %894 = vrot.lane.b32.xlu0 %v24, 32
  %v895 = vpop.permute.xlu0 %894
  %896 = vrot.lane.b32.xlu0 %v27, 32
  %v897 = vpop.permute.xlu0 %896
  %v901 = vsel %vm146, %v394, 0
  %v904 = vsel %vm146, %v470, 0
  %906 = vmatprep.subr.mxu0 0.0
  %907 = vmatpush1.msra.mxu0 %v895
  %908 = vmatprep.subr.mxu0 0.0
  %909 = vmatpush1.msra.mxu0 %v897
  %910 = vmatprep.subr.mxu0 0.0
  %911 = vmatpush1.msra.mxu0 0.0
  %912 = vmatprep.subr.mxu0 0.0
  %913 = vmatpush1.msra.mxu0 0.0
  %914 = vmatprep.subr.mxu0 0.0
  %915 = vmatpush1.msra.mxu0 0.0
  %916 = vmatprep.subr.mxu0 0.0
  %917 = vmatpush1.msra.mxu0 0.0
  %918 = vmatprep.subr.mxu0 0.0
  %919 = vmatpush1.msra.mxu0 0.0
  %920 = vmatprep.subr.mxu0 0.0
  %921 = vmatpush1.msra.mxu0 0.0
  %922 = vmatprep.subr.mxu0 0.0
  %923 = vmatpush1.msra.mxu0 0.0
  %924 = vmatprep.subr.mxu0 0.0
  %925 = vmatpush1.msra.mxu0 0.0
  %926 = vmatprep.subr.mxu0 0.0
  %927 = vmatpush1.msra.mxu0 0.0
  %928 = vmatprep.subr.mxu0 0.0
  %929 = vmatpush1.msra.mxu0 0.0
  %930 = vmatprep.subr.mxu0 0.0
  %931 = vmatpush1.msra.mxu0 0.0
  %932 = vmatprep.subr.mxu0 0.0
  %933 = vmatpush1.msra.mxu0 0.0
  %934 = vmatprep.subr.mxu0 0.0
  %935 = vmatpush1.msra.mxu0 0.0
  %936 = vmatprep.subr.mxu0 0.0
  %937 = vmatpush1.msra.mxu0 0.0
  %938 = vmatprep.subr.mxu0 0.0
  %939 = vmatpush1.msra.mxu0 0.0
  %940 = vmatprep.subr.mxu0 0.0
  %941 = vmatpush1.msra.mxu0 0.0
  %942 = vmatprep.subr.mxu0 0.0
  %943 = vmatpush1.msra.mxu0 0.0
  %944 = vmatprep.subr.mxu0 0.0
  %945 = vmatpush1.msra.mxu0 0.0
  %946 = vmatprep.subr.mxu0 0.0
  %947 = vmatpush1.msra.mxu0 0.0
  %948 = vmatprep.subr.mxu0 0.0
  %949 = vmatpush1.msra.mxu0 0.0
  %950 = vmatprep.subr.mxu0 0.0
  %951 = vmatpush1.msra.mxu0 0.0
  %952 = vmatprep.subr.mxu0 0.0
  %953 = vmatpush1.msra.mxu0 0.0
  %954 = vmatprep.subr.mxu0 0.0
  %955 = vmatpush1.msra.mxu0 0.0
  %956 = vmatprep.subr.mxu0 0.0
  %957 = vmatpush1.msra.mxu0 0.0
  %958 = vmatprep.subr.mxu0 0.0
  %959 = vmatpush1.msra.mxu0 0.0
  %960 = vmatprep.subr.mxu0 0.0
  %961 = vmatpush1.msra.mxu0 0.0
  %962 = vmatprep.subr.mxu0 0.0
  %963 = vmatpush1.msra.mxu0 0.0
  %964 = vmatprep.subr.mxu0 0.0
  %965 = vmatpush1.msra.mxu0 0.0
  %966 = vmatprep.subr.mxu0 0.0
  %967 = vmatpush1.msra.mxu0 0.0
  %968 = vmatprep.subr.mxu0 0.0
  %969 = vmatpush1.msra.mxu0 0.0
  %970 = vmatprep.mubr.f32.mxu0 0.0
  %971 = vmatmul.mubr.f32.gmra.mrb[0].mxu0 %v901
  %v972 = vpop.f32.mrb[0].mxu0
  %v973 = vadd.f32 %v884, %v972
  %v974 = vpop.f32.mrb[0].mxu0
  %975 = vmatprep.mubr.f32.mxu0 0.0
  %976 = vmatmul.mubr.f32.gmra.mrb[0].mxu0 %v904
  %v977 = vpop.f32.mrb[0].mxu0
  %v978 = vadd.f32 %v889, %v977
  %v979 = vpop.f32.mrb[0].mxu0
  %980 = vdwg.mxu0
  %v981 = vlaneseq
  %v982 = vshrl.u32 %v981, 7
  %v983 = vsub.s32 1, %v982
  %v984 = vrot.slane %v44, %v983
  %v985 = vadd.f32 %v973, %v984
  %v986 = vadd.f32 %v978, %v984
  %v987 = vadd.f32 %v20, %v985
  %v988 = vadd.f32 %v21, %v986
  %v989 = vsel %vm49, %v987, 0.0
  %990 = vadd.xlane.f32.xlu0 %v989
  %v991 = vpop.xlane.xlu0 %990
  %v992 = vsel %vm49, %v988, 0.0
  %993 = vadd.xlane.f32.xlu0 %v992
  %v994 = vpop.xlane.xlu0 %993
  %v995 = vrcp.pop 32.0
  %v996 = vmul.f32 %v991, %v995
  %v997 = vmul.f32 %v994, %v995
  %v998 = vsub.f32 %v987, %v996
  %v999 = vsub.f32 %v988, %v997
  %v1000 = vmul.f32 %v998, %v998
  %v1001 = vmul.f32 %v999, %v999
  %v1002 = vsel %vm49, %v1000, 0.0
  %1003 = vadd.xlane.f32.xlu0 %v1002
  %v1004 = vpop.xlane.xlu0 %1003
  %v1005 = vsel %vm49, %v1001, 0.0
  %1006 = vadd.xlane.f32.xlu0 %v1005
  %v1007 = vpop.xlane.xlu0 %1006
  %v1008 = vmul.f32 %v1004, %v995
  %v1009 = vmul.f32 %v1007, %v995
  %v1010 = vadd.f32 %v1008, 1e-12
  %v1011 = vadd.f32 %v1009, 1e-12
  %v1012 = vrsqrt.pop %v1010
  %v1013 = vrsqrt.pop %v1011
  %v1014 = vmul.f32 %v998, %v1012
  %v1015 = vmul.f32 %v999, %v1013
  %1017 = vrot.lane.b32.xlu0 %v984, 96
  %v1018 = vpop.permute.xlu0 %1017
  %v1020 = vmul.f32 %v1014, %v1018
  %v1021 = vmul.f32 %v1015, %v1018
  %1022 = vrot.lane.b32.xlu0 %v984, 64
  %v1023 = vpop.permute.xlu0 %1022
  %v1025 = vadd.f32 %v1020, %v1023
  %v1026 = vadd.f32 %v1021, %v1023
  %v1027 = vlaneseq
  %v1028 = vshrl.u32 %v1027, 7
  %v1029 = vsub.s32 2, %v1028
  %v1030 = vrot.slane %v44, %v1029
  %v1032 = vsel %vm49, %v1025, 0
  %v1035 = vsel %vm49, %v1026, 0
  %1037 = vmatprep.subr.mxu0 0.0
  %1038 = vmatpush1.msra.mxu0 %v25
  %1039 = vmatprep.subr.mxu0 0.0
  %1040 = vmatpush1.msra.mxu0 %v28
  %1041 = vmatprep.subr.mxu0 0.0
  %1042 = vmatpush1.msra.mxu0 %v31
  %1043 = vmatprep.subr.mxu0 0.0
  %1044 = vmatpush1.msra.mxu0 %v34
  %1045 = vmatprep.subr.mxu0 0.0
  %1046 = vmatpush1.msra.mxu0 0.0
  %1047 = vmatprep.subr.mxu0 0.0
  %1048 = vmatpush1.msra.mxu0 0.0
  %1049 = vmatprep.subr.mxu0 0.0
  %1050 = vmatpush1.msra.mxu0 0.0
  %1051 = vmatprep.subr.mxu0 0.0
  %1052 = vmatpush1.msra.mxu0 0.0
  %1053 = vmatprep.subr.mxu0 0.0
  %1054 = vmatpush1.msra.mxu0 0.0
  %1055 = vmatprep.subr.mxu0 0.0
  %1056 = vmatpush1.msra.mxu0 0.0
  %1057 = vmatprep.subr.mxu0 0.0
  %1058 = vmatpush1.msra.mxu0 0.0
  %1059 = vmatprep.subr.mxu0 0.0
  %1060 = vmatpush1.msra.mxu0 0.0
  %1061 = vmatprep.subr.mxu0 0.0
  %1062 = vmatpush1.msra.mxu0 0.0
  %1063 = vmatprep.subr.mxu0 0.0
  %1064 = vmatpush1.msra.mxu0 0.0
  %1065 = vmatprep.subr.mxu0 0.0
  %1066 = vmatpush1.msra.mxu0 0.0
  %1067 = vmatprep.subr.mxu0 0.0
  %1068 = vmatpush1.msra.mxu0 0.0
  %1069 = vmatprep.subr.mxu0 0.0
  %1070 = vmatpush1.msra.mxu0 0.0
  %1071 = vmatprep.subr.mxu0 0.0
  %1072 = vmatpush1.msra.mxu0 0.0
  %1073 = vmatprep.subr.mxu0 0.0
  %1074 = vmatpush1.msra.mxu0 0.0
  %1075 = vmatprep.subr.mxu0 0.0
  %1076 = vmatpush1.msra.mxu0 0.0
  %1077 = vmatprep.subr.mxu0 0.0
  %1078 = vmatpush1.msra.mxu0 0.0
  %1079 = vmatprep.subr.mxu0 0.0
  %1080 = vmatpush1.msra.mxu0 0.0
  %1081 = vmatprep.subr.mxu0 0.0
  %1082 = vmatpush1.msra.mxu0 0.0
  %1083 = vmatprep.subr.mxu0 0.0
  %1084 = vmatpush1.msra.mxu0 0.0
  %1085 = vmatprep.subr.mxu0 0.0
  %1086 = vmatpush1.msra.mxu0 0.0
  %1087 = vmatprep.subr.mxu0 0.0
  %1088 = vmatpush1.msra.mxu0 0.0
  %1089 = vmatprep.subr.mxu0 0.0
  %1090 = vmatpush1.msra.mxu0 0.0
  %1091 = vmatprep.subr.mxu0 0.0
  %1092 = vmatpush1.msra.mxu0 0.0
  %1093 = vmatprep.subr.mxu0 0.0
  %1094 = vmatpush1.msra.mxu0 0.0
  %1095 = vmatprep.subr.mxu0 0.0
  %1096 = vmatpush1.msra.mxu0 0.0
  %1097 = vmatprep.subr.mxu0 0.0
  %1098 = vmatpush1.msra.mxu0 0.0
  %1099 = vmatprep.subr.mxu0 0.0
  %1100 = vmatpush1.msra.mxu0 0.0
  %1101 = vmatprep.mubr.f32.mxu0 0.0
  %1102 = vmatmul.mubr.f32.gmra.mrb[0].mxu0 %v1032
  %v1103 = vpop.f32.mrb[0].mxu0
  %v1104 = vadd.f32 %v1030, %v1103
  %v1105 = vpop.f32.mrb[0].mxu0
  %1106 = vmatprep.mubr.f32.mxu0 0.0
  %1107 = vmatmul.mubr.f32.gmra.mrb[0].mxu0 %v1035
  %v1108 = vpop.f32.mrb[0].mxu0
  %v1109 = vadd.f32 %v1030, %v1108
  %v1110 = vpop.f32.mrb[0].mxu0
  %1111 = vdwg.mxu0
  %v1112 = vmul.f32 %v1104, 0.5
  %v1113 = vmul.f32 %v1109, 0.5
  %v1114 = vmul.f32 %v1104, 0.044715
  %v1115 = vmul.f32 %v1109, 0.044715
  %v1116 = vmul.f32 %v1114, %v1104
  %v1117 = vmul.f32 %v1115, %v1109
  %v1118 = vmul.f32 %v1116, %v1104
  %v1119 = vmul.f32 %v1117, %v1109
  %v1120 = vadd.f32 %v1104, %v1118
  %v1121 = vadd.f32 %v1109, %v1119
  %v1122 = vmul.f32 %v1120, 0.7978846
  %v1123 = vmul.f32 %v1121, 0.7978846
  %v1124 = vtanh.pop %v1122
  %v1125 = vtanh.pop %v1123
  %v1126 = vadd.f32 %v1124, 1.0
  %v1127 = vadd.f32 %v1125, 1.0
  %v1128 = vmul.f32 %v1112, %v1126
  %v1129 = vmul.f32 %v1113, %v1127
  %v1130 = vlaneseq
  %v1131 = vshrl.u32 %v1130, 7
  %v1132 = vsub.s32 3, %v1131
  %v1133 = vrot.slane %v44, %v1132
  %vm1134 = vcmask 523264
  %v1136 = vsel %vm1134, %v1128, 0
  %v1139 = vsel %vm1134, %v1129, 0
  %1141 = vmatprep.subr.mxu0 0.0
  %1142 = vmatpush1.msra.mxu0 %v36
  %1143 = vmatprep.subr.mxu0 0.0
  %1144 = vmatpush1.msra.mxu0 %v37
  %1145 = vmatprep.subr.mxu0 0.0
  %1146 = vmatpush1.msra.mxu0 %v38
  %1147 = vmatprep.subr.mxu0 0.0
  %1148 = vmatpush1.msra.mxu0 %v39
  %1149 = vmatprep.subr.mxu0 0.0
  %1150 = vmatpush1.msra.mxu0 %v40
  %1151 = vmatprep.subr.mxu0 0.0
  %1152 = vmatpush1.msra.mxu0 %v41
  %1153 = vmatprep.subr.mxu0 0.0
  %1154 = vmatpush1.msra.mxu0 %v42
  %1155 = vmatprep.subr.mxu0 0.0
  %1156 = vmatpush1.msra.mxu0 %v43
  %1157 = vmatprep.subr.mxu0 0.0
  %1158 = vmatpush1.msra.mxu0 0.0
  %1159 = vmatprep.subr.mxu0 0.0
  %1160 = vmatpush1.msra.mxu0 0.0
  %1161 = vmatprep.subr.mxu0 0.0
  %1162 = vmatpush1.msra.mxu0 0.0
  %1163 = vmatprep.subr.mxu0 0.0
  %1164 = vmatpush1.msra.mxu0 0.0
  %1165 = vmatprep.subr.mxu0 0.0
  %1166 = vmatpush1.msra.mxu0 0.0
  %1167 = vmatprep.subr.mxu0 0.0
  %1168 = vmatpush1.msra.mxu0 0.0
  %1169 = vmatprep.subr.mxu0 0.0
  %1170 = vmatpush1.msra.mxu0 0.0
  %1171 = vmatprep.subr.mxu0 0.0
  %1172 = vmatpush1.msra.mxu0 0.0
  %1173 = vmatprep.subr.mxu0 0.0
  %1174 = vmatpush1.msra.mxu0 0.0
  %1175 = vmatprep.subr.mxu0 0.0
  %1176 = vmatpush1.msra.mxu0 0.0
  %1177 = vmatprep.subr.mxu0 0.0
  %1178 = vmatpush1.msra.mxu0 0.0
  %1179 = vmatprep.subr.mxu0 0.0
  %1180 = vmatpush1.msra.mxu0 0.0
  %1181 = vmatprep.subr.mxu0 0.0
  %1182 = vmatpush1.msra.mxu0 0.0
  %1183 = vmatprep.subr.mxu0 0.0
  %1184 = vmatpush1.msra.mxu0 0.0
  %1185 = vmatprep.subr.mxu0 0.0
  %1186 = vmatpush1.msra.mxu0 0.0
  %1187 = vmatprep.subr.mxu0 0.0
  %1188 = vmatpush1.msra.mxu0 0.0
  %1189 = vmatprep.subr.mxu0 0.0
  %1190 = vmatpush1.msra.mxu0 0.0
  %1191 = vmatprep.subr.mxu0 0.0
  %1192 = vmatpush1.msra.mxu0 0.0
  %1193 = vmatprep.subr.mxu0 0.0
  %1194 = vmatpush1.msra.mxu0 0.0
  %1195 = vmatprep.subr.mxu0 0.0
  %1196 = vmatpush1.msra.mxu0 0.0
  %1197 = vmatprep.subr.mxu0 0.0
  %1198 = vmatpush1.msra.mxu0 0.0
  %1199 = vmatprep.subr.mxu0 0.0
  %1200 = vmatpush1.msra.mxu0 0.0
  %1201 = vmatprep.subr.mxu0 0.0
  %1202 = vmatpush1.msra.mxu0 0.0
  %1203 = vmatprep.subr.mxu0 0.0
  %1204 = vmatpush1.msra.mxu0 0.0
  %1205 = vmatprep.mubr.f32.mxu0 0.0
  %1206 = vmatmul.mubr.f32.gmra.mrb[0].mxu0 %v1136
  %v1207 = vpop.f32.mrb[0].mxu0
  %v1208 = vadd.f32 %v1133, %v1207
  %v1209 = vpop.f32.mrb[0].mxu0
  %1210 = vmatprep.mubr.f32.mxu0 0.0
  %1211 = vmatmul.mubr.f32.gmra.mrb[0].mxu0 %v1139
  %v1212 = vpop.f32.mrb[0].mxu0
  %v1213 = vadd.f32 %v1133, %v1212
  %v1214 = vpop.f32.mrb[0].mxu0
  %1215 = vdwg.mxu0
  %v1216 = vadd.f32 %v1025, %v1208
  %v1217 = vadd.f32 %v1026, %v1213
  %v1218 = vsel %vm49, %v1216, 0.0
  %1219 = vadd.xlane.f32.xlu0 %v1218
  %v1220 = vpop.xlane.xlu0 %1219
  %v1221 = vsel %vm49, %v1217, 0.0
  %1222 = vadd.xlane.f32.xlu0 %v1221
  %v1223 = vpop.xlane.xlu0 %1222
  %v1224 = vmul.f32 %v1220, %v995
  %v1225 = vmul.f32 %v1223, %v995
  %v1226 = vsub.f32 %v1216, %v1224
  %v1227 = vsub.f32 %v1217, %v1225
  %v1228 = vmul.f32 %v1226, %v1226
  %v1229 = vmul.f32 %v1227, %v1227
  %v1230 = vsel %vm49, %v1228, 0.0
  %1231 = vadd.xlane.f32.xlu0 %v1230
  %v1232 = vpop.xlane.xlu0 %1231
  %v1233 = vsel %vm49, %v1229, 0.0
  %1234 = vadd.xlane.f32.xlu0 %v1233
  %v1235 = vpop.xlane.xlu0 %1234
  %v1236 = vmul.f32 %v1232, %v995
  %v1237 = vmul.f32 %v1235, %v995
  %v1238 = vadd.f32 %v1236, 1e-12
  %v1239 = vadd.f32 %v1237, 1e-12
  %v1240 = vrsqrt.pop %v1238
  %v1241 = vrsqrt.pop %v1239
  %v1242 = vmul.f32 %v1226, %v1240
  %v1243 = vmul.f32 %v1227, %v1241
  %1245 = vrot.lane.b32.xlu0 %v1030, 64
  %v1246 = vpop.permute.xlu0 %1245
  %v1248 = vmul.f32 %v1242, %v1246
  %v1249 = vmul.f32 %v1243, %v1246
  %1251 = vrot.lane.b32.xlu0 %v1133, 96
  %v1252 = vpop.permute.xlu0 %1251
  %v1254 = vadd.f32 %v1248, %v1252
  %v1255 = vadd.f32 %v1249, %v1252
  %v1258 = vrot.slane %v1255, 7
  %vm1259 = vcmask 1041409
  %v1260 = vsel %vm1259, %v1258, %v1254
  %1265 = vrot.lane.b32.xlu0 %v25, 64
  %v1266 = vpop.permute.xlu0 %1265
  %1267 = vrot.lane.b32.xlu0 %v28, 64
  %v1268 = vpop.permute.xlu0 %1267
  %1269 = vrot.lane.b32.xlu0 %v31, 64
  %v1270 = vpop.permute.xlu0 %1269
  %1271 = vrot.lane.b32.xlu0 %v34, 64
  %v1272 = vpop.permute.xlu0 %1271
  %1277 = vrot.lane.b32.xlu0 %v1133, 64
  %v1278 = vpop.permute.xlu0 %1277
  %v1280 = vsel %vm49, %v1260, 0
  %1282 = vmatprep.subr.mxu0 0.0
  %1283 = vmatpush1.msra.mxu0 %v1266
  %1284 = vmatprep.subr.mxu0 0.0
  %1285 = vmatpush1.msra.mxu0 %v1268
  %1286 = vmatprep.subr.mxu0 0.0
  %1287 = vmatpush1.msra.mxu0 %v1270
  %1288 = vmatprep.subr.mxu0 0.0
  %1289 = vmatpush1.msra.mxu0 %v1272
  %1290 = vmatprep.subr.mxu0 0.0
  %1291 = vmatpush1.msra.mxu0 0.0
  %1292 = vmatprep.subr.mxu0 0.0
  %1293 = vmatpush1.msra.mxu0 0.0
  %1294 = vmatprep.subr.mxu0 0.0
  %1295 = vmatpush1.msra.mxu0 0.0
  %1296 = vmatprep.subr.mxu0 0.0
  %1297 = vmatpush1.msra.mxu0 0.0
  %1298 = vmatprep.subr.mxu0 0.0
  %1299 = vmatpush1.msra.mxu0 0.0
  %1300 = vmatprep.subr.mxu0 0.0
  %1301 = vmatpush1.msra.mxu0 0.0
  %1302 = vmatprep.subr.mxu0 0.0
  %1303 = vmatpush1.msra.mxu0 0.0
  %1304 = vmatprep.subr.mxu0 0.0
  %1305 = vmatpush1.msra.mxu0 0.0
  %1306 = vmatprep.subr.mxu0 0.0
  %1307 = vmatpush1.msra.mxu0 0.0
  %1308 = vmatprep.subr.mxu0 0.0
  %1309 = vmatpush1.msra.mxu0 0.0
  %1310 = vmatprep.subr.mxu0 0.0
  %1311 = vmatpush1.msra.mxu0 0.0
  %1312 = vmatprep.subr.mxu0 0.0
  %1313 = vmatpush1.msra.mxu0 0.0
  %1314 = vmatprep.subr.mxu0 0.0
  %1315 = vmatpush1.msra.mxu0 0.0
  %1316 = vmatprep.subr.mxu0 0.0
  %1317 = vmatpush1.msra.mxu0 0.0
  %1318 = vmatprep.subr.mxu0 0.0
  %1319 = vmatpush1.msra.mxu0 0.0
  %1320 = vmatprep.subr.mxu0 0.0
  %1321 = vmatpush1.msra.mxu0 0.0
  %1322 = vmatprep.subr.mxu0 0.0
  %1323 = vmatpush1.msra.mxu0 0.0
  %1324 = vmatprep.subr.mxu0 0.0
  %1325 = vmatpush1.msra.mxu0 0.0
  %1326 = vmatprep.subr.mxu0 0.0
  %1327 = vmatpush1.msra.mxu0 0.0
  %1328 = vmatprep.subr.mxu0 0.0
  %1329 = vmatpush1.msra.mxu0 0.0
  %1330 = vmatprep.subr.mxu0 0.0
  %1331 = vmatpush1.msra.mxu0 0.0
  %1332 = vmatprep.subr.mxu0 0.0
  %1333 = vmatpush1.msra.mxu0 0.0
  %1334 = vmatprep.subr.mxu0 0.0
  %1335 = vmatpush1.msra.mxu0 0.0
  %1336 = vmatprep.subr.mxu0 0.0
  %1337 = vmatpush1.msra.mxu0 0.0
  %1338 = vmatprep.subr.mxu0 0.0
  %1339 = vmatpush1.msra.mxu0 0.0
  %1340 = vmatprep.subr.mxu0 0.0
  %1341 = vmatpush1.msra.mxu0 0.0
  %1342 = vmatprep.subr.mxu0 0.0
  %1343 = vmatpush1.msra.mxu0 0.0
  %1344 = vmatprep.subr.mxu0 0.0
  %1345 = vmatpush1.msra.mxu0 0.0
  %1346 = vmatprep.mubr.f32.mxu0 0.0
  %1347 = vmatmul.mubr.f32.gmra.mrb[0].mxu0 %v1280
  %v1348 = vpop.f32.mrb[0].mxu0
  %v1349 = vadd.f32 %v1278, %v1348
  %v1350 = vpop.f32.mrb[0].mxu0
  %1351 = vdwg.mxu0
  %v1352 = vtanh.pop %v1349
  %v1353 = vlaneseq
  %v1354 = vshrl.u32 %v1353, 7
  %v1355 = vsub.s32 4, %v1354
  %v1356 = vrot.slane %v44, %v1355
  %1361 = vrot.lane.b32.xlu0 %v25, 32
  %v1362 = vpop.permute.xlu0 %1361
  %1363 = vrot.lane.b32.xlu0 %v26, 32
  %v1364 = vpop.permute.xlu0 %1363
  %1365 = vrot.lane.b32.xlu0 %v28, 32
  %v1366 = vpop.permute.xlu0 %1365
  %1367 = vrot.lane.b32.xlu0 %v29, 32
  %v1368 = vpop.permute.xlu0 %1367
  %1369 = vrot.lane.b32.xlu0 %v31, 32
  %v1370 = vpop.permute.xlu0 %1369
  %1371 = vrot.lane.b32.xlu0 %v32, 32
  %v1372 = vpop.permute.xlu0 %1371
  %1373 = vrot.lane.b32.xlu0 %v34, 32
  %v1374 = vpop.permute.xlu0 %1373
  %1375 = vrot.lane.b32.xlu0 %v35, 32
  %v1376 = vpop.permute.xlu0 %1375
  %v1377 = vsel %vm49, %v1362, %v1364
  %v1378 = vsel %vm49, %v1366, %v1368
  %v1379 = vsel %vm49, %v1370, %v1372
  %v1380 = vsel %vm49, %v1374, %v1376
  %v1386 = vsel %vm49, %v1352, 0
  %1388 = vmatprep.subr.mxu0 0.0
  %1389 = vmatpush1.msra.mxu0 %v1377
  %1390 = vmatprep.subr.mxu0 0.0
  %1391 = vmatpush1.msra.mxu0 %v1378
  %1392 = vmatprep.subr.mxu0 0.0
  %1393 = vmatpush1.msra.mxu0 %v1379
  %1394 = vmatprep.subr.mxu0 0.0
  %1395 = vmatpush1.msra.mxu0 %v1380
  %1396 = vmatprep.subr.mxu0 0.0
  %1397 = vmatpush1.msra.mxu0 0.0
  %1398 = vmatprep.subr.mxu0 0.0
  %1399 = vmatpush1.msra.mxu0 0.0
  %1400 = vmatprep.subr.mxu0 0.0
  %1401 = vmatpush1.msra.mxu0 0.0
  %1402 = vmatprep.subr.mxu0 0.0
  %1403 = vmatpush1.msra.mxu0 0.0
  %1404 = vmatprep.subr.mxu0 0.0
  %1405 = vmatpush1.msra.mxu0 0.0
  %1406 = vmatprep.subr.mxu0 0.0
  %1407 = vmatpush1.msra.mxu0 0.0
  %1408 = vmatprep.subr.mxu0 0.0
  %1409 = vmatpush1.msra.mxu0 0.0
  %1410 = vmatprep.subr.mxu0 0.0
  %1411 = vmatpush1.msra.mxu0 0.0
  %1412 = vmatprep.subr.mxu0 0.0
  %1413 = vmatpush1.msra.mxu0 0.0
  %1414 = vmatprep.subr.mxu0 0.0
  %1415 = vmatpush1.msra.mxu0 0.0
  %1416 = vmatprep.subr.mxu0 0.0
  %1417 = vmatpush1.msra.mxu0 0.0
  %1418 = vmatprep.subr.mxu0 0.0
  %1419 = vmatpush1.msra.mxu0 0.0
  %1420 = vmatprep.subr.mxu0 0.0
  %1421 = vmatpush1.msra.mxu0 0.0
  %1422 = vmatprep.subr.mxu0 0.0
  %1423 = vmatpush1.msra.mxu0 0.0
  %1424 = vmatprep.subr.mxu0 0.0
  %1425 = vmatpush1.msra.mxu0 0.0
  %1426 = vmatprep.subr.mxu0 0.0
  %1427 = vmatpush1.msra.mxu0 0.0
  %1428 = vmatprep.subr.mxu0 0.0
  %1429 = vmatpush1.msra.mxu0 0.0
  %1430 = vmatprep.subr.mxu0 0.0
  %1431 = vmatpush1.msra.mxu0 0.0
  %1432 = vmatprep.subr.mxu0 0.0
  %1433 = vmatpush1.msra.mxu0 0.0
  %1434 = vmatprep.subr.mxu0 0.0
  %1435 = vmatpush1.msra.mxu0 0.0
  %1436 = vmatprep.subr.mxu0 0.0
  %1437 = vmatpush1.msra.mxu0 0.0
  %1438 = vmatprep.subr.mxu0 0.0
  %1439 = vmatpush1.msra.mxu0 0.0
  %1440 = vmatprep.subr.mxu0 0.0
  %1441 = vmatpush1.msra.mxu0 0.0
  %1442 = vmatprep.subr.mxu0 0.0
  %1443 = vmatpush1.msra.mxu0 0.0
  %1444 = vmatprep.subr.mxu0 0.0
  %1445 = vmatpush1.msra.mxu0 0.0
  %1446 = vmatprep.subr.mxu0 0.0
  %1447 = vmatpush1.msra.mxu0 0.0
  %1448 = vmatprep.subr.mxu0 0.0
  %1449 = vmatpush1.msra.mxu0 0.0
  %1450 = vmatprep.subr.mxu0 0.0
  %1451 = vmatpush1.msra.mxu0 0.0
  %1452 = vmatprep.mubr.f32.mxu0 0.0
  %1453 = vmatmul.mubr.f32.gmra.mrb[0].mxu0 %v1386
  %v1454 = vpop.f32.mrb[0].mxu0
  %v1455 = vadd.f32 %v1356, %v1454
  %v1456 = vpop.f32.mrb[0].mxu0
  %1457 = vdwg.mxu0
  %vm1458 = vcmp.gt.f32.partialorder %v1455, 0.0
  %v1459 = vmul.f32 %v1455, 0.01
  %v1460 = vsel %vm1458, %v1455, %v1459
  %1469 = vrot.lane.b32.xlu0 %v36, 96
  %v1470 = vpop.permute.xlu0 %1469
  %1471 = vrot.lane.b32.xlu0 %v37, 96
  %v1472 = vpop.permute.xlu0 %1471
  %1473 = vrot.lane.b32.xlu0 %v38, 96
  %v1474 = vpop.permute.xlu0 %1473
  %1475 = vrot.lane.b32.xlu0 %v39, 96
  %v1476 = vpop.permute.xlu0 %1475
  %1477 = vrot.lane.b32.xlu0 %v40, 96
  %v1478 = vpop.permute.xlu0 %1477
  %1479 = vrot.lane.b32.xlu0 %v41, 96
  %v1480 = vpop.permute.xlu0 %1479
  %1481 = vrot.lane.b32.xlu0 %v42, 96
  %v1482 = vpop.permute.xlu0 %1481
  %1483 = vrot.lane.b32.xlu0 %v43, 96
  %v1484 = vpop.permute.xlu0 %1483
  %1494 = vrot.lane.b32.xlu0 %v1356, 64
  %v1495 = vpop.permute.xlu0 %1494
  %v1498 = vsel %vm1134, %v1460, 0
  %1500 = vmatprep.subr.mxu0 0.0
  %1501 = vmatpush1.msra.mxu0 %v1470
  %1502 = vmatprep.subr.mxu0 0.0
  %1503 = vmatpush1.msra.mxu0 %v1472
  %1504 = vmatprep.subr.mxu0 0.0
  %1505 = vmatpush1.msra.mxu0 %v1474
  %1506 = vmatprep.subr.mxu0 0.0
  %1507 = vmatpush1.msra.mxu0 %v1476
  %1508 = vmatprep.subr.mxu0 0.0
  %1509 = vmatpush1.msra.mxu0 %v1478
  %1510 = vmatprep.subr.mxu0 0.0
  %1511 = vmatpush1.msra.mxu0 %v1480
  %1512 = vmatprep.subr.mxu0 0.0
  %1513 = vmatpush1.msra.mxu0 %v1482
  %1514 = vmatprep.subr.mxu0 0.0
  %1515 = vmatpush1.msra.mxu0 %v1484
  %1516 = vmatprep.subr.mxu0 0.0
  %1517 = vmatpush1.msra.mxu0 0.0
  %1518 = vmatprep.subr.mxu0 0.0
  %1519 = vmatpush1.msra.mxu0 0.0
  %1520 = vmatprep.subr.mxu0 0.0
  %1521 = vmatpush1.msra.mxu0 0.0
  %1522 = vmatprep.subr.mxu0 0.0
  %1523 = vmatpush1.msra.mxu0 0.0
  %1524 = vmatprep.subr.mxu0 0.0
  %1525 = vmatpush1.msra.mxu0 0.0
  %1526 = vmatprep.subr.mxu0 0.0
  %1527 = vmatpush1.msra.mxu0 0.0
  %1528 = vmatprep.subr.mxu0 0.0
  %1529 = vmatpush1.msra.mxu0 0.0
  %1530 = vmatprep.subr.mxu0 0.0
  %1531 = vmatpush1.msra.mxu0 0.0
  %1532 = vmatprep.subr.mxu0 0.0
  %1533 = vmatpush1.msra.mxu0 0.0
  %1534 = vmatprep.subr.mxu0 0.0
  %1535 = vmatpush1.msra.mxu0 0.0
  %1536 = vmatprep.subr.mxu0 0.0
  %1537 = vmatpush1.msra.mxu0 0.0
  %1538 = vmatprep.subr.mxu0 0.0
  %1539 = vmatpush1.msra.mxu0 0.0
  %1540 = vmatprep.subr.mxu0 0.0
  %1541 = vmatpush1.msra.mxu0 0.0
  %1542 = vmatprep.subr.mxu0 0.0
  %1543 = vmatpush1.msra.mxu0 0.0
  %1544 = vmatprep.subr.mxu0 0.0
  %1545 = vmatpush1.msra.mxu0 0.0
  %1546 = vmatprep.subr.mxu0 0.0
  %1547 = vmatpush1.msra.mxu0 0.0
  %1548 = vmatprep.subr.mxu0 0.0
  %1549 = vmatpush1.msra.mxu0 0.0
  %1550 = vmatprep.subr.mxu0 0.0
  %1551 = vmatpush1.msra.mxu0 0.0
  %1552 = vmatprep.subr.mxu0 0.0
  %1553 = vmatpush1.msra.mxu0 0.0
  %1554 = vmatprep.subr.mxu0 0.0
  %1555 = vmatpush1.msra.mxu0 0.0
  %1556 = vmatprep.subr.mxu0 0.0
  %1557 = vmatpush1.msra.mxu0 0.0
  %1558 = vmatprep.subr.mxu0 0.0
  %1559 = vmatpush1.msra.mxu0 0.0
  %1560 = vmatprep.subr.mxu0 0.0
  %1561 = vmatpush1.msra.mxu0 0.0
  %1562 = vmatprep.subr.mxu0 0.0
  %1563 = vmatpush1.msra.mxu0 0.0
  %1564 = vmatprep.mubr.f32.mxu0 0.0
  %1565 = vmatmul.mubr.f32.gmra.mrb[0].mxu0 %v1498
  %v1566 = vpop.f32.mrb[0].mxu0
  %v1567 = vadd.f32 %v1495, %v1566
  %v1568 = vpop.f32.mrb[0].mxu0
  %1569 = vdwg.mxu0
  %v1570 = vsub.f32 0.0, %v1567
  %v1571 = vmul.f32 %v1570, 1.442695
  %v1572 = vpow.pop %v1571
  %v1573 = vadd.f32 %v1572, 1.0
  %v1574 = vrcp.pop %v1573
  %1575 = vrot.lane.b32.xlu0 %v1356, 56
  %v1576 = vpop.permute.xlu0 %1575
  %v1578 = vmul.f32 %v1574, %v1576
  %vm1579 = vcmask 58368
  %v1580 = vsel %vm1579, %v1578, 0.0
  %1581 = vadd.xlane.f32.xlu0 %v1580
  %v1582 = vpop.xlane.xlu0 %1581
  %v1583 = vadd.f32 %v1582, %v1356
  %1585 = vset.pattern.permute.xlu0 80
  %1586 = vperm.xlu0 %1585, %v1583
  %v1587 = vpop.permute.xlu0 %1586
  %1589 = vst [vmem:[%s5] sm:$0x3] %v1587
  // Predicated region
  $region22: #{model_forward.1} parent=0 // pred_check
    _
  $region23: #{model_forward.1} parent=0 // pred_check_branch
    %1591 = sbr.rel (0) target = $region25
  $region24: #{model_forward.1} parent=0 // pred_region
    _
  $region25: #{model_forward.1} parent=0 // pred_fallthru
    _
  // Predicated region
  $region26: #{model_forward.1} parent=0 // pred_check
    _
  $region27: #{model_forward.1} parent=0 // pred_check_branch
    %1593 = sbr.rel (0) target = $region29
  $region28: #{model_forward.1} parent=0 // pred_region
    _
  $region29: #{model_forward.1} parent=0 // pred_fallthru
    _

</llo_original>
